<compile_context>
chip_gen: v6e
topology: v6e:2x2x1
jax: 0.10.0
libtpu: 0.0.40
codegen_flags: <defaults>
</compile_context>

<pallas_src>
import math

import jax
import jax.numpy as jnp
from jax.experimental import pallas as pl
from jax.experimental.pallas import tpu as pltpu

_HP = jax.lax.Precision.HIGHEST


def _mlp_kernel(yt_ref, w1_ref, b1_ref, w2_ref, b2_ref, w3_ref, b3_ref, out_ref):
    # yt_ref: [d, TB]  (batch on the lane axis)
    x = yt_ref[...]

    # fc1 + tanh : [H, d] @ [d, TB] -> [H, TB]
    h = jnp.dot(w1_ref[...], x, preferred_element_type=jnp.float32, precision=_HP)
    h = jnp.tanh(h + b1_ref[...])

    # fc2 + tanh : [H, H] @ [H, TB] -> [H, TB]
    h = jnp.dot(w2_ref[...], h, preferred_element_type=jnp.float32, precision=_HP)
    h = jnp.tanh(h + b2_ref[...])

    # fc3 + sigmoid : [1, H] @ [H, TB] -> [1, TB]  (lane-dense output)
    o = jnp.dot(w3_ref[...], h, preferred_element_type=jnp.float32, precision=_HP)
    out_ref[...] = jax.nn.sigmoid(o + b3_ref[...]).astype(out_ref.dtype)


def net_forward(y, w1, b1, w2, b2, w3, b3, *, block_b=8192):
    """y: [B, d]; w1: [H, d]; b1: [H, 1]; w2: [H, H]; b2: [H, 1];
    w3: [1, H]; b3: [1, 1].  Returns [B, 1]."""
    B, d = y.shape
    H = w1.shape[0]
    assert w1.shape == (H, d) and w2.shape == (H, H) and w3.shape == (1, H)
    assert b1.shape == (H, 1) and b2.shape == (H, 1) and b3.shape == (1, 1)

    # Batch on the lane axis.
    yt = y.T  # [d, B]

    if B <= block_b:
        # Single block: block dims may equal the full array dims.
        TB, Bp = B, B
    else:
        # Tiled: TB must be a multiple of 128 for lane-dense tiles.
        assert block_b % 128 == 0
        TB = block_b
        Bp = pl.cdiv(B, TB) * TB
        if Bp != B:
            yt = jnp.pad(yt, ((0, 0), (0, Bp - B)))
    grid = (Bp // TB,)

    def resident(shape):
        # Weight / bias blocks: full array, same block every grid step.
        return pl.BlockSpec(shape, lambda i: (0, 0))

    cost = pl.CostEstimate(
        flops=2 * B * (d * H + H * H + H),
        transcendentals=B * (2 * H + 1),
        bytes_accessed=4 * (B * (d + 1) + H * d + H * H + H + 2 * H + 1),
    )

    out_padded = pl.pallas_call(
        _mlp_kernel,
        out_shape=jax.ShapeDtypeStruct((1, Bp), jnp.float32),
        grid=grid,
        in_specs=[
            pl.BlockSpec((d, TB), lambda i: (0, i)),  # y^T streamed along batch
            resident((H, d)),
            resident((H, 1)),
            resident((H, H)),
            resident((H, 1)),
            resident((1, H)),
            resident((1, 1)),
        ],
        out_specs=pl.BlockSpec((1, TB), lambda i: (0, i)),
        compiler_params=pltpu.CompilerParams(
            dimension_semantics=("parallel",),
        ),
        cost_estimate=cost,
    )(yt, w1, b1, w2, b2, w3, b3)

    return out_padded[0, :B][:, None]  # [B, 1]


def init_params(key, d, internal_neurons):
    """Deterministic init mimicking nn.Linear (uniform +/- 1/sqrt(fan_in)),
    stored in PyTorch layout: W [out, in], b [out, 1]."""
    ks = jax.random.split(key, 6)

    def linear(kw, kb, fan_in, fan_out):
        bound = 1.0 / math.sqrt(fan_in)
        w = jax.random.uniform(kw, (fan_out, fan_in), jnp.float32, -bound, bound)
        b = jax.random.uniform(kb, (fan_out, 1), jnp.float32, -bound, bound)
        return w, b

    w1, b1 = linear(ks[0], ks[1], d, internal_neurons)
    w2, b2 = linear(ks[2], ks[3], internal_neurons, internal_neurons)
    w3, b3 = linear(ks[4], ks[5], internal_neurons, 1)
    return w1, b1, w2, b2, w3, b3


def _reference(y, params):
    w1, b1, w2, b2, w3, b3 = params
    r = jnp.tanh(jnp.dot(y, w1.T, precision=_HP) + b1.T)
    r = jnp.tanh(jnp.dot(r, w2.T, precision=_HP) + b2.T)
    return jax.nn.sigmoid(jnp.dot(r, w3.T, precision=_HP) + b3.T)


if __name__ == "__main__":
    d = 16
    internal_neurons = 32

    key = jax.random.PRNGKey(0)
    k_x, k_x2, k_p = jax.random.split(key, 3)
    params = init_params(k_p, d, internal_neurons)

    # Case 1: tiny batch (single block path).
    batch = 8
    y = jax.random.normal(k_x, (batch, d), dtype=jnp.float32)
    out = jax.block_until_ready(net_forward(y, *params))
    ref = _reference(y, params)
    assert out.shape == (batch, 1)
    assert jnp.allclose(out, ref, atol=1e-5), "mismatch vs reference (small batch)"

    # Case 2: multi-tile path with padding (grid > 1, lane-dense 128-wide tiles).
    batch2 = 300
    y2 = jax.random.normal(k_x2, (batch2, d), dtype=jnp.float32)
    out2 = jax.block_until_ready(net_forward(y2, *params, block_b=128))
    ref2 = _reference(y2, params)
    assert out2.shape == (batch2, 1)
    assert jnp.allclose(out2, ref2, atol=1e-5), "mismatch vs reference (tiled batch)"

    print("KERNEL_OK")
</pallas_src>

<mosaic_0001>
module attributes {stable_mosaic.version = 11 : i64} {
  func.func @_mlp_kernel(%arg0: i32, %arg1: memref<16x8xf32, #tpu.memory_space<vmem>>, %arg2: memref<32x16xf32, #tpu.memory_space<vmem>>, %arg3: memref<32x1xf32, #tpu.memory_space<vmem>>, %arg4: memref<32x32xf32, #tpu.memory_space<vmem>>, %arg5: memref<32x1xf32, #tpu.memory_space<vmem>>, %arg6: memref<1x32xf32, #tpu.memory_space<vmem>>, %arg7: memref<1x1xf32, #tpu.memory_space<vmem>>, %arg8: memref<1x8xf32, #tpu.memory_space<vmem>>) attributes {dimension_semantics = [#tpu.dimension_semantics<parallel>], iteration_bounds = array<i64: 1>, scalar_prefetch = 0 : i64, scratch_operands = 0 : i64, tpu.core_type = #tpu.core_type<tc>, window_params = [{transform_indices = @transform_0, window_bounds = array<i64: 16, 8>}, {pipeline_mode = #tpu.pipeline_mode<synchronous>, transform_indices = @transform_1, window_bounds = array<i64: 32, 16>}, {pipeline_mode = #tpu.pipeline_mode<synchronous>, transform_indices = @transform_2, window_bounds = array<i64: 32, 1>}, {pipeline_mode = #tpu.pipeline_mode<synchronous>, transform_indices = @transform_3, window_bounds = array<i64: 32, 32>}, {pipeline_mode = #tpu.pipeline_mode<synchronous>, transform_indices = @transform_4, window_bounds = array<i64: 32, 1>}, {pipeline_mode = #tpu.pipeline_mode<synchronous>, transform_indices = @transform_5, window_bounds = array<i64: 1, 32>}, {pipeline_mode = #tpu.pipeline_mode<synchronous>, transform_indices = @transform_6, window_bounds = array<i64: 1, 1>}, {transform_indices = @transform_7, window_bounds = array<i64: 1, 8>}]} {
    %c0 = arith.constant 0 : index
    %c0_0 = arith.constant 0 : index
    %0 = vector.load %arg1[%c0, %c0_0] : memref<16x8xf32, #tpu.memory_space<vmem>>, vector<16x8xf32>
    %c0_1 = arith.constant 0 : index
    %c0_2 = arith.constant 0 : index
    %1 = vector.load %arg2[%c0_1, %c0_2] : memref<32x16xf32, #tpu.memory_space<vmem>>, vector<32x16xf32>
    %cst = arith.constant dense<0.000000e+00> : vector<32x8xf32>
    %2 = tpu.matmul %1, %0, %cst {dimension_numbers = #tpu.dot_dimension_numbers<[1], [0], [0], [1], [0, 0, 1, 1], [], []>, precision = #tpu.contract_precision<fp32>} : vector<32x16xf32>, vector<16x8xf32>, vector<32x8xf32> -> vector<32x8xf32>
    %c0_3 = arith.constant 0 : index
    %c0_4 = arith.constant 0 : index
    %3 = vector.load %arg3[%c0_3, %c0_4] : memref<32x1xf32, #tpu.memory_space<vmem>>, vector<32x1xf32>
    %4 = vector.broadcast %3 : vector<32x1xf32> to vector<32x8xf32>
    %5 = arith.addf %2, %4 : vector<32x8xf32>
    %6 = math.tanh %5 : vector<32x8xf32>
    %c0_5 = arith.constant 0 : index
    %c0_6 = arith.constant 0 : index
    %7 = vector.load %arg4[%c0_5, %c0_6] : memref<32x32xf32, #tpu.memory_space<vmem>>, vector<32x32xf32>
    %cst_7 = arith.constant dense<0.000000e+00> : vector<32x8xf32>
    %8 = tpu.matmul %7, %6, %cst_7 {dimension_numbers = #tpu.dot_dimension_numbers<[1], [0], [0], [1], [0, 0, 1, 1], [], []>, precision = #tpu.contract_precision<fp32>} : vector<32x32xf32>, vector<32x8xf32>, vector<32x8xf32> -> vector<32x8xf32>
    %c0_8 = arith.constant 0 : index
    %c0_9 = arith.constant 0 : index
    %9 = vector.load %arg5[%c0_8, %c0_9] : memref<32x1xf32, #tpu.memory_space<vmem>>, vector<32x1xf32>
    %10 = vector.broadcast %9 : vector<32x1xf32> to vector<32x8xf32>
    %11 = arith.addf %8, %10 : vector<32x8xf32>
    %12 = math.tanh %11 : vector<32x8xf32>
    %c0_10 = arith.constant 0 : index
    %c0_11 = arith.constant 0 : index
    %13 = vector.load %arg6[%c0_10, %c0_11] : memref<1x32xf32, #tpu.memory_space<vmem>>, vector<1x32xf32>
    %cst_12 = arith.constant dense<0.000000e+00> : vector<1x8xf32>
    %14 = tpu.matmul %13, %12, %cst_12 {dimension_numbers = #tpu.dot_dimension_numbers<[1], [0], [0], [1], [0, 0, 1, 1], [], []>, precision = #tpu.contract_precision<fp32>} : vector<1x32xf32>, vector<32x8xf32>, vector<1x8xf32> -> vector<1x8xf32>
    %c0_13 = arith.constant 0 : index
    %c0_14 = arith.constant 0 : index
    %15 = vector.load %arg7[%c0_13, %c0_14] : memref<1x1xf32, #tpu.memory_space<vmem>>, vector<1x1xf32>
    %16 = vector.broadcast %15 : vector<1x1xf32> to vector<1x8xf32>
    %17 = arith.addf %14, %16 : vector<1x8xf32>
    %18 = arith.negf %17 : vector<1x8xf32>
    %19 = math.exp %18 : vector<1x8xf32>
    %cst_15 = arith.constant 1.000000e+00 : f32
    %20 = vector.broadcast %cst_15 : f32 to vector<1x8xf32>
    %21 = arith.addf %20, %19 : vector<1x8xf32>
    %22 = arith.divf %20, %21 : vector<1x8xf32>
    %c0_16 = arith.constant 0 : index
    %c0_17 = arith.constant 0 : index
    %23 = vector.load %arg8[%c0_16, %c0_17] : memref<1x8xf32, #tpu.memory_space<vmem>>, vector<1x8xf32>
    tpu.vector_store %arg8[%c0_16, %c0_17], %22 {strides = array<i32>} : memref<1x8xf32, #tpu.memory_space<vmem>>, vector<1x8xf32>,
    return
  }
  func.func @transform_0(%arg0: i32) -> (i32, i32) {
    %c0_i32 = arith.constant 0 : i32
    %c0_i32_0 = arith.constant 0 : i32
    return %c0_i32, %arg0 : i32, i32
  }
  func.func @transform_1(%arg0: i32) -> (i32, i32) {
    %c0_i32 = arith.constant 0 : i32
    %c0_i32_0 = arith.constant 0 : i32
    %c0_i32_1 = arith.constant 0 : i32
    return %c0_i32, %c0_i32_0 : i32, i32
  }
  func.func @transform_2(%arg0: i32) -> (i32, i32) {
    %c0_i32 = arith.constant 0 : i32
    %c0_i32_0 = arith.constant 0 : i32
    %c0_i32_1 = arith.constant 0 : i32
    return %c0_i32, %c0_i32_0 : i32, i32
  }
  func.func @transform_3(%arg0: i32) -> (i32, i32) {
    %c0_i32 = arith.constant 0 : i32
    %c0_i32_0 = arith.constant 0 : i32
    %c0_i32_1 = arith.constant 0 : i32
    return %c0_i32, %c0_i32_0 : i32, i32
  }
  func.func @transform_4(%arg0: i32) -> (i32, i32) {
    %c0_i32 = arith.constant 0 : i32
    %c0_i32_0 = arith.constant 0 : i32
    %c0_i32_1 = arith.constant 0 : i32
    return %c0_i32, %c0_i32_0 : i32, i32
  }
  func.func @transform_5(%arg0: i32) -> (i32, i32) {
    %c0_i32 = arith.constant 0 : i32
    %c0_i32_0 = arith.constant 0 : i32
    %c0_i32_1 = arith.constant 0 : i32
    return %c0_i32, %c0_i32_0 : i32, i32
  }
  func.func @transform_6(%arg0: i32) -> (i32, i32) {
    %c0_i32 = arith.constant 0 : i32
    %c0_i32_0 = arith.constant 0 : i32
    %c0_i32_1 = arith.constant 0 : i32
    return %c0_i32, %c0_i32_0 : i32, i32
  }
  func.func @transform_7(%arg0: i32) -> (i32, i32) {
    %c0_i32 = arith.constant 0 : i32
    %c0_i32_0 = arith.constant 0 : i32
    return %c0_i32, %arg0 : i32, i32
  }
}

</mosaic_0001>

<llo_original>
// kernel: tpu_custom_call.1
$region0: #{tpu_custom_call.1}
  #allocation0 [shape = 'u32[]', space=smem, size = 0x4, offset = 0x4, fixed_abs, tag = 'smem constant byte address 0x4 - core index']
  #allocation1 [shape = 'u32[144,128]{1,0:T(1,128)}', space=vmem, size = 0x12000, scoped, tag = 'internal scratch']
  #allocation2 [shape = 'f32[1,1]{1,0:T(1,128)S(1)}', space=vmem, size = 0x200, scoped, tag = 'scoped memory for tpu_custom_call.1']
  %s0 = inlined_call_operand.vmem [shape: f32[16,8], index: 0, kind: input, shape index: {}]
  %s1 = inlined_call_operand.vmem [shape: f32[32,16], index: 1, kind: input, shape index: {}]
  %s2 = inlined_call_operand.vmem [shape: f32[32,1], index: 2, kind: input, shape index: {}]
  %s3 = inlined_call_operand.vmem [shape: f32[32,32], index: 3, kind: input, shape index: {}]
  %s4 = inlined_call_operand.vmem [shape: f32[32,1], index: 4, kind: input, shape index: {}]
  %s5 = inlined_call_operand.vmem [shape: f32[1,32], index: 5, kind: input, shape index: {}]
  %s6 = inlined_call_operand.<no memory space> [shape: f32[1,1], index: 6, kind: input, shape index: {}]
  %s7 = inlined_call_operand.hbm [shape: f32[1,8], index: 7, kind: output, shape index: {}]
  %s8 = sld [smem:[#allocation0]]
  $region38: #{tpu_custom_call.1} parent=0
    _
  %s10 = ssub.s32 1, %s8
  %s11 = scalar_select 0, %s10, %s8
  %v12 = vstv %s6
  %13 = vst [vmem:[#allocation2] sm:$0x1] %v12
  $region1: #{tpu_custom_call.1} parent=0
    #allocation3 [shape = 'u8[512]{0}', space=vmem, size = 0x400, scoped, tag = 'output window, operand 0, single buffered']
    #allocation4 [shape = 's32[1]{0}', space=sflag, size = 0x4, scoped, tag = 'scoped memory for tpu_custom_call.1']
    %14 = vsyncpa [#allocation4], 0
    // Predicated region
    $region2: #{tpu_custom_call.1} parent=1 // pred_check
      _
    $region3: #{tpu_custom_call.1} parent=1 // pred_check_branch
      %16 = sbr.rel (0) target = $region5
    $region4: #{tpu_custom_call.1} parent=1 // pred_region
      _
    $region5: #{tpu_custom_call.1} parent=1 // pred_fallthru
      _
    // Predicated region
    $region6: #{tpu_custom_call.1} parent=1 // pred_check
      _
    $region7: #{tpu_custom_call.1} parent=1 // pred_check_branch
      %18 = sbr.rel (0) target = $region9
    $region8: #{tpu_custom_call.1} parent=1 // pred_region
      _
    $region9: #{tpu_custom_call.1} parent=1 // pred_fallthru
      _
    // Predicated region
    $region10: #{tpu_custom_call.1} parent=1 // pred_check
      _
    $region11: #{tpu_custom_call.1} parent=1 // pred_check_branch
      %20 = sbr.rel (0) target = $region13
    $region12: #{tpu_custom_call.1} parent=1 // pred_region
      _
    $region13: #{tpu_custom_call.1} parent=1 // pred_fallthru
      _
    // Predicated region
    $region14: #{tpu_custom_call.1} parent=1 // pred_check
      _
    $region15: #{tpu_custom_call.1} parent=1 // pred_check_branch
      %22 = sbr.rel (0) target = $region17
    $region16: #{tpu_custom_call.1} parent=1 // pred_region
      _
    $region17: #{tpu_custom_call.1} parent=1 // pred_fallthru
      _
    // Predicated region
    $region18: #{tpu_custom_call.1} parent=1 // pred_check
      _
    $region19: #{tpu_custom_call.1} parent=1 // pred_check_branch
      %24 = sbr.rel (0) target = $region21
    $region20: #{tpu_custom_call.1} parent=1 // pred_region
      _
    $region21: #{tpu_custom_call.1} parent=1 // pred_fallthru
      _
    // Predicated region
    $region22: #{tpu_custom_call.1} parent=1 // pred_check
      _
    $region23: #{tpu_custom_call.1} parent=1 // pred_check_branch
      %26 = sbr.rel (0) target = $region25
    $region24: #{tpu_custom_call.1} parent=1 // pred_region
      _
    $region25: #{tpu_custom_call.1} parent=1 // pred_fallthru
      _
    // Predicated region
    $region26: #{tpu_custom_call.1} parent=1 // pred_check
      _
    $region27: #{tpu_custom_call.1} parent=1 // pred_check_branch
      %28 = sbr.rel (0) target = $region29
    $region28: #{tpu_custom_call.1} parent=1 // pred_region
      _
    $region29: #{tpu_custom_call.1} parent=1 // pred_fallthru
      _
    %v29 = vld [vmem:[%s0] sm:$0xff]
    %v30 = vld [vmem:[%s0 + $0x8] sm:$0xff]
    %v31 = vld [vmem:[%s1] sm:$0xff]
    %v32 = vld [vmem:[%s1 + $0x8] sm:$0xff]
    %v33 = vld [vmem:[%s1 + $0x10] sm:$0xff]
    %v34 = vld [vmem:[%s1 + $0x18] sm:$0xff]
    %v35 = vld [vmem:[%s2] sm:$0xff]
    %v36 = vld [vmem:[%s2 + $0x8] sm:$0xff]
    %v37 = vld [vmem:[%s2 + $0x10] sm:$0xff]
    %v38 = vld [vmem:[%s2 + $0x18] sm:$0xff]
    %40 = vset.pattern.permute.xlu0 0
    %41 = vperm.xlu0 %40, %v35
    %v42 = vpop.permute.xlu0 %41
    %45 = vset.pattern.permute.xlu0 0
    %46 = vperm.xlu0 %45, %v36
    %v47 = vpop.permute.xlu0 %46
    %50 = vset.pattern.permute.xlu0 0
    %51 = vperm.xlu0 %50, %v37
    %v52 = vpop.permute.xlu0 %51
    %55 = vset.pattern.permute.xlu0 0
    %56 = vperm.xlu0 %55, %v38
    %v57 = vpop.permute.xlu0 %56
    %vm59 = vcmask 130048
    %v61 = vsel %vm59, %v31, 0
    %v64 = vsel %vm59, %v32, 0
    %v67 = vsel %vm59, %v33, 0
    %v70 = vsel %vm59, %v34, 0
    %72 = vmatprep.subr.mxu0 0.0
    %73 = vmatpush1.msra.mxu0 0.0
    %74 = vmatprep.subr.mxu0 0.0
    %75 = vmatpush1.msra.mxu0 0.0
    %76 = vmatprep.subr.mxu0 0.0
    %77 = vmatpush1.msra.mxu0 0.0
    %78 = vmatprep.subr.mxu0 0.0
    %79 = vmatpush1.msra.mxu0 0.0
    %80 = vmatprep.subr.mxu0 0.0
    %81 = vmatpush1.msra.mxu0 0.0
    %82 = vmatprep.subr.mxu0 0.0
    %83 = vmatpush1.msra.mxu0 0.0
    %84 = vmatprep.subr.mxu0 0.0
    %85 = vmatpush1.msra.mxu0 0.0
    %86 = vmatprep.subr.mxu0 0.0
    %87 = vmatpush1.msra.mxu0 0.0
    %88 = vmatprep.subr.mxu0 0.0
    %89 = vmatpush1.msra.mxu0 0.0
    %90 = vmatprep.subr.mxu0 0.0
    %91 = vmatpush1.msra.mxu0 0.0
    %92 = vmatprep.subr.mxu0 0.0
    %93 = vmatpush1.msra.mxu0 0.0
    %94 = vmatprep.subr.mxu0 0.0
    %95 = vmatpush1.msra.mxu0 0.0
    %96 = vmatprep.subr.mxu0 0.0
    %97 = vmatpush1.msra.mxu0 0.0
    %98 = vmatprep.subr.mxu0 0.0
    %99 = vmatpush1.msra.mxu0 0.0
    %100 = vmatprep.subr.mxu0 0.0
    %v101 = vand.u32 %v30, 4294901760
    %102 = vmatpush1.msra.mxu0 %v101
    %103 = vmatprep.subr.mxu0 0.0
    %v104 = vand.u32 %v29, 4294901760
    %105 = vmatpush1.msra.mxu0 %v104
    %106 = vmatprep.subr.mxu0 0.0
    %107 = vmatpush2.msra.mxu0 0.0
    %108 = vmatprep.subr.mxu0 0.0
    %109 = vmatpush2.msra.mxu0 0.0
    %110 = vmatprep.subr.mxu0 0.0
    %111 = vmatpush2.msra.mxu0 0.0
    %112 = vmatprep.subr.mxu0 0.0
    %113 = vmatpush2.msra.mxu0 0.0
    %114 = vmatprep.subr.mxu0 0.0
    %115 = vmatpush2.msra.mxu0 0.0
    %116 = vmatprep.subr.mxu0 0.0
    %117 = vmatpush2.msra.mxu0 0.0
    %118 = vmatprep.subr.mxu0 0.0
    %119 = vmatpush2.msra.mxu0 0.0
    %120 = vmatprep.subr.mxu0 0.0
    %121 = vmatpush2.msra.mxu0 0.0
    %122 = vmatprep.subr.mxu0 0.0
    %123 = vmatpush2.msra.mxu0 0.0
    %124 = vmatprep.subr.mxu0 0.0
    %125 = vmatpush2.msra.mxu0 0.0
    %126 = vmatprep.subr.mxu0 0.0
    %127 = vmatpush2.msra.mxu0 0.0
    %128 = vmatprep.subr.mxu0 0.0
    %129 = vmatpush2.msra.mxu0 0.0
    %130 = vmatprep.subr.mxu0 0.0
    %131 = vmatpush2.msra.mxu0 0.0
    %132 = vmatprep.subr.mxu0 0.0
    %133 = vmatpush2.msra.mxu0 0.0
    %134 = vmatprep.subr.mxu0 0.0
    %135 = vmatpush2.msra.mxu0 0.0
    %136 = vmatprep.subr.mxu0 0.0
    %137 = vmatpush2.msra.mxu0 0.0
    %138 = vmatprep.mubr.f32.mxu0 0.0
    %v139 = vand.u32 %v61, 4294901760
    %v140 = vsub.f32 %v61, %v139
    %v141 = vand.u32 %v140, 4294901760
    %v142 = vsub.f32 %v140, %v141
    %v143 = vand.u32 %v142, 4294901760
    %144 = vmatmul.mubr.f32.gmra.mxu0 %v143
    %v145 = vpop.f32.mrf.mxu0
    %v146 = vadd.f32 %v42, %v145
    %v147 = vpop.f32.mrf.mxu0
    %148 = vmatprep.mubr.f32.mxu0 0.0
    %v149 = vand.u32 %v64, 4294901760
    %v150 = vsub.f32 %v64, %v149
    %v151 = vand.u32 %v150, 4294901760
    %v152 = vsub.f32 %v150, %v151
    %v153 = vand.u32 %v152, 4294901760
    %154 = vmatmul.mubr.f32.gmra.mxu0 %v153
    %v155 = vpop.f32.mrf.mxu0
    %v156 = vadd.f32 %v47, %v155
    %v157 = vpop.f32.mrf.mxu0
    %158 = vmatprep.mubr.f32.mxu0 0.0
    %v159 = vand.u32 %v67, 4294901760
    %v160 = vsub.f32 %v67, %v159
    %v161 = vand.u32 %v160, 4294901760
    %v162 = vsub.f32 %v160, %v161
    %v163 = vand.u32 %v162, 4294901760
    %164 = vmatmul.mubr.f32.gmra.mxu0 %v163
    %v165 = vpop.f32.mrf.mxu0
    %v166 = vadd.f32 %v52, %v165
    %v167 = vpop.f32.mrf.mxu0
    %168 = vmatprep.mubr.f32.mxu0 0.0
    %v169 = vand.u32 %v70, 4294901760
    %v170 = vsub.f32 %v70, %v169
    %v171 = vand.u32 %v170, 4294901760
    %v172 = vsub.f32 %v170, %v171
    %v173 = vand.u32 %v172, 4294901760
    %174 = vmatmul.mubr.f32.gmra.mxu0 %v173
    %v175 = vpop.f32.mrf.mxu0
    %v176 = vadd.f32 %v57, %v175
    %v177 = vpop.f32.mrf.mxu0
    %178 = vdwg.mxu0
    %179 = vmatprep.subr.mxu0 0.0
    %180 = vmatpush1.msra.mxu0 0.0
    %181 = vmatprep.subr.mxu0 0.0
    %182 = vmatpush1.msra.mxu0 0.0
    %183 = vmatprep.subr.mxu0 0.0
    %184 = vmatpush1.msra.mxu0 0.0
    %185 = vmatprep.subr.mxu0 0.0
    %186 = vmatpush1.msra.mxu0 0.0
    %187 = vmatprep.subr.mxu0 0.0
    %188 = vmatpush1.msra.mxu0 0.0
    %189 = vmatprep.subr.mxu0 0.0
    %190 = vmatpush1.msra.mxu0 0.0
    %191 = vmatprep.subr.mxu0 0.0
    %192 = vmatpush1.msra.mxu0 0.0
    %193 = vmatprep.subr.mxu0 0.0
    %194 = vmatpush1.msra.mxu0 0.0
    %195 = vmatprep.subr.mxu0 0.0
    %196 = vmatpush1.msra.mxu0 0.0
    %197 = vmatprep.subr.mxu0 0.0
    %198 = vmatpush1.msra.mxu0 0.0
    %199 = vmatprep.subr.mxu0 0.0
    %200 = vmatpush1.msra.mxu0 0.0
    %201 = vmatprep.subr.mxu0 0.0
    %202 = vmatpush1.msra.mxu0 0.0
    %203 = vmatprep.subr.mxu0 0.0
    %204 = vmatpush1.msra.mxu0 0.0
    %205 = vmatprep.subr.mxu0 0.0
    %206 = vmatpush1.msra.mxu0 0.0
    %207 = vmatprep.subr.mxu0 0.0
    %v208 = vand.u32 %v30, 4294901760
    %v209 = vsub.f32 %v30, %v208
    %v210 = vand.u32 %v209, 4294901760
    %v211 = vsub.f32 %v209, %v210
    %v212 = vand.u32 %v211, 4294901760
    %213 = vmatpush1.msra.mxu0 %v212
    %214 = vmatprep.subr.mxu0 0.0
    %v215 = vand.u32 %v29, 4294901760
    %v216 = vsub.f32 %v29, %v215
    %v217 = vand.u32 %v216, 4294901760
    %v218 = vsub.f32 %v216, %v217
    %v219 = vand.u32 %v218, 4294901760
    %220 = vmatpush1.msra.mxu0 %v219
    %221 = vmatprep.subr.mxu0 0.0
    %222 = vmatpush2.msra.mxu0 0.0
    %223 = vmatprep.subr.mxu0 0.0
    %224 = vmatpush2.msra.mxu0 0.0
    %225 = vmatprep.subr.mxu0 0.0
    %226 = vmatpush2.msra.mxu0 0.0
    %227 = vmatprep.subr.mxu0 0.0
    %228 = vmatpush2.msra.mxu0 0.0
    %229 = vmatprep.subr.mxu0 0.0
    %230 = vmatpush2.msra.mxu0 0.0
    %231 = vmatprep.subr.mxu0 0.0
    %232 = vmatpush2.msra.mxu0 0.0
    %233 = vmatprep.subr.mxu0 0.0
    %234 = vmatpush2.msra.mxu0 0.0
    %235 = vmatprep.subr.mxu0 0.0
    %236 = vmatpush2.msra.mxu0 0.0
    %237 = vmatprep.subr.mxu0 0.0
    %238 = vmatpush2.msra.mxu0 0.0
    %239 = vmatprep.subr.mxu0 0.0
    %240 = vmatpush2.msra.mxu0 0.0
    %241 = vmatprep.subr.mxu0 0.0
    %242 = vmatpush2.msra.mxu0 0.0
    %243 = vmatprep.subr.mxu0 0.0
    %244 = vmatpush2.msra.mxu0 0.0
    %245 = vmatprep.subr.mxu0 0.0
    %246 = vmatpush2.msra.mxu0 0.0
    %247 = vmatprep.subr.mxu0 0.0
    %248 = vmatpush2.msra.mxu0 0.0
    %249 = vmatprep.subr.mxu0 0.0
    %250 = vmatpush2.msra.mxu0 0.0
    %251 = vmatprep.subr.mxu0 0.0
    %252 = vmatpush2.msra.mxu0 0.0
    %253 = vmatprep.mubr.f32.mxu0 0.0
    %v254 = vand.u32 %v61, 4294901760
    %255 = vmatmul.mubr.f32.gmra.mxu0 %v254
    %v256 = vpop.f32.mrf.mxu0
    %v257 = vadd.f32 %v146, %v256
    %v258 = vpop.f32.mrf.mxu0
    %259 = vmatprep.mubr.f32.mxu0 0.0
    %v260 = vand.u32 %v64, 4294901760
    %261 = vmatmul.mubr.f32.gmra.mxu0 %v260
    %v262 = vpop.f32.mrf.mxu0
    %v263 = vadd.f32 %v156, %v262
    %v264 = vpop.f32.mrf.mxu0
    %265 = vmatprep.mubr.f32.mxu0 0.0
    %v266 = vand.u32 %v67, 4294901760
    %267 = vmatmul.mubr.f32.gmra.mxu0 %v266
    %v268 = vpop.f32.mrf.mxu0
    %v269 = vadd.f32 %v166, %v268
    %v270 = vpop.f32.mrf.mxu0
    %271 = vmatprep.mubr.f32.mxu0 0.0
    %v272 = vand.u32 %v70, 4294901760
    %273 = vmatmul.mubr.f32.gmra.mxu0 %v272
    %v274 = vpop.f32.mrf.mxu0
    %v275 = vadd.f32 %v176, %v274
    %v276 = vpop.f32.mrf.mxu0
    %277 = vdwg.mxu0
    %278 = vmatprep.subr.mxu0 0.0
    %279 = vmatpush1.msra.mxu0 0.0
    %280 = vmatprep.subr.mxu0 0.0
    %281 = vmatpush1.msra.mxu0 0.0
    %282 = vmatprep.subr.mxu0 0.0
    %283 = vmatpush1.msra.mxu0 0.0
    %284 = vmatprep.subr.mxu0 0.0
    %285 = vmatpush1.msra.mxu0 0.0
    %286 = vmatprep.subr.mxu0 0.0
    %287 = vmatpush1.msra.mxu0 0.0
    %288 = vmatprep.subr.mxu0 0.0
    %289 = vmatpush1.msra.mxu0 0.0
    %290 = vmatprep.subr.mxu0 0.0
    %291 = vmatpush1.msra.mxu0 0.0
    %292 = vmatprep.subr.mxu0 0.0
    %293 = vmatpush1.msra.mxu0 0.0
    %294 = vmatprep.subr.mxu0 0.0
    %295 = vmatpush1.msra.mxu0 0.0
    %296 = vmatprep.subr.mxu0 0.0
    %297 = vmatpush1.msra.mxu0 0.0
    %298 = vmatprep.subr.mxu0 0.0
    %299 = vmatpush1.msra.mxu0 0.0
    %300 = vmatprep.subr.mxu0 0.0
    %301 = vmatpush1.msra.mxu0 0.0
    %302 = vmatprep.subr.mxu0 0.0
    %303 = vmatpush1.msra.mxu0 0.0
    %304 = vmatprep.subr.mxu0 0.0
    %305 = vmatpush1.msra.mxu0 0.0
    %306 = vmatprep.subr.mxu0 0.0
    %v307 = vand.u32 %v30, 4294901760
    %v308 = vsub.f32 %v30, %v307
    %309 = vmatpush1.msra.mxu0 %v308
    %310 = vmatprep.subr.mxu0 0.0
    %v311 = vand.u32 %v29, 4294901760
    %v312 = vsub.f32 %v29, %v311
    %313 = vmatpush1.msra.mxu0 %v312
    %314 = vmatprep.subr.mxu0 0.0
    %315 = vmatpush2.msra.mxu0 0.0
    %316 = vmatprep.subr.mxu0 0.0
    %317 = vmatpush2.msra.mxu0 0.0
    %318 = vmatprep.subr.mxu0 0.0
    %319 = vmatpush2.msra.mxu0 0.0
    %320 = vmatprep.subr.mxu0 0.0
    %321 = vmatpush2.msra.mxu0 0.0
    %322 = vmatprep.subr.mxu0 0.0
    %323 = vmatpush2.msra.mxu0 0.0
    %324 = vmatprep.subr.mxu0 0.0
    %325 = vmatpush2.msra.mxu0 0.0
    %326 = vmatprep.subr.mxu0 0.0
    %327 = vmatpush2.msra.mxu0 0.0
    %328 = vmatprep.subr.mxu0 0.0
    %329 = vmatpush2.msra.mxu0 0.0
    %330 = vmatprep.subr.mxu0 0.0
    %331 = vmatpush2.msra.mxu0 0.0
    %332 = vmatprep.subr.mxu0 0.0
    %333 = vmatpush2.msra.mxu0 0.0
    %334 = vmatprep.subr.mxu0 0.0
    %335 = vmatpush2.msra.mxu0 0.0
    %336 = vmatprep.subr.mxu0 0.0
    %337 = vmatpush2.msra.mxu0 0.0
    %338 = vmatprep.subr.mxu0 0.0
    %339 = vmatpush2.msra.mxu0 0.0
    %340 = vmatprep.subr.mxu0 0.0
    %341 = vmatpush2.msra.mxu0 0.0
    %342 = vmatprep.subr.mxu0 0.0
    %343 = vmatpush2.msra.mxu0 0.0
    %344 = vmatprep.subr.mxu0 0.0
    %345 = vmatpush2.msra.mxu0 0.0
    %346 = vmatprep.mubr.f32.mxu0 0.0
    %v347 = vand.u32 %v61, 4294901760
    %v348 = vsub.f32 %v61, %v347
    %349 = vmatmul.mubr.f32.gmra.mxu0 %v348
    %v350 = vpop.f32.mrf.mxu0
    %v351 = vadd.f32 %v257, %v350
    %v352 = vpop.f32.mrf.mxu0
    %353 = vmatprep.mubr.f32.mxu0 0.0
    %v354 = vand.u32 %v64, 4294901760
    %v355 = vsub.f32 %v64, %v354
    %356 = vmatmul.mubr.f32.gmra.mxu0 %v355
    %v357 = vpop.f32.mrf.mxu0
    %v358 = vadd.f32 %v263, %v357
    %v359 = vpop.f32.mrf.mxu0
    %360 = vmatprep.mubr.f32.mxu0 0.0
    %v361 = vand.u32 %v67, 4294901760
    %v362 = vsub.f32 %v67, %v361
    %363 = vmatmul.mubr.f32.gmra.mxu0 %v362
    %v364 = vpop.f32.mrf.mxu0
    %v365 = vadd.f32 %v269, %v364
    %v366 = vpop.f32.mrf.mxu0
    %367 = vmatprep.mubr.f32.mxu0 0.0
    %v368 = vand.u32 %v70, 4294901760
    %v369 = vsub.f32 %v70, %v368
    %370 = vmatmul.mubr.f32.gmra.mxu0 %v369
    %v371 = vpop.f32.mrf.mxu0
    %v372 = vadd.f32 %v275, %v371
    %v373 = vpop.f32.mrf.mxu0
    %374 = vdwg.mxu0
    %375 = vmatprep.subr.mxu0 0.0
    %376 = vmatpush1.msra.mxu0 0.0
    %377 = vmatprep.subr.mxu0 0.0
    %378 = vmatpush1.msra.mxu0 0.0
    %379 = vmatprep.subr.mxu0 0.0
    %380 = vmatpush1.msra.mxu0 0.0
    %381 = vmatprep.subr.mxu0 0.0
    %382 = vmatpush1.msra.mxu0 0.0
    %383 = vmatprep.subr.mxu0 0.0
    %384 = vmatpush1.msra.mxu0 0.0
    %385 = vmatprep.subr.mxu0 0.0
    %386 = vmatpush1.msra.mxu0 0.0
    %387 = vmatprep.subr.mxu0 0.0
    %388 = vmatpush1.msra.mxu0 0.0
    %389 = vmatprep.subr.mxu0 0.0
    %390 = vmatpush1.msra.mxu0 0.0
    %391 = vmatprep.subr.mxu0 0.0
    %392 = vmatpush1.msra.mxu0 0.0
    %393 = vmatprep.subr.mxu0 0.0
    %394 = vmatpush1.msra.mxu0 0.0
    %395 = vmatprep.subr.mxu0 0.0
    %396 = vmatpush1.msra.mxu0 0.0
    %397 = vmatprep.subr.mxu0 0.0
    %398 = vmatpush1.msra.mxu0 0.0
    %399 = vmatprep.subr.mxu0 0.0
    %400 = vmatpush1.msra.mxu0 0.0
    %401 = vmatprep.subr.mxu0 0.0
    %402 = vmatpush1.msra.mxu0 0.0
    %403 = vmatprep.subr.mxu0 0.0
    %v404 = vand.u32 %v30, 4294901760
    %405 = vmatpush1.msra.mxu0 %v404
    %406 = vmatprep.subr.mxu0 0.0
    %v407 = vand.u32 %v29, 4294901760
    %408 = vmatpush1.msra.mxu0 %v407
    %409 = vmatprep.subr.mxu0 0.0
    %410 = vmatpush2.msra.mxu0 0.0
    %411 = vmatprep.subr.mxu0 0.0
    %412 = vmatpush2.msra.mxu0 0.0
    %413 = vmatprep.subr.mxu0 0.0
    %414 = vmatpush2.msra.mxu0 0.0
    %415 = vmatprep.subr.mxu0 0.0
    %416 = vmatpush2.msra.mxu0 0.0
    %417 = vmatprep.subr.mxu0 0.0
    %418 = vmatpush2.msra.mxu0 0.0
    %419 = vmatprep.subr.mxu0 0.0
    %420 = vmatpush2.msra.mxu0 0.0
    %421 = vmatprep.subr.mxu0 0.0
    %422 = vmatpush2.msra.mxu0 0.0
    %423 = vmatprep.subr.mxu0 0.0
    %424 = vmatpush2.msra.mxu0 0.0
    %425 = vmatprep.subr.mxu0 0.0
    %426 = vmatpush2.msra.mxu0 0.0
    %427 = vmatprep.subr.mxu0 0.0
    %428 = vmatpush2.msra.mxu0 0.0
    %429 = vmatprep.subr.mxu0 0.0
    %430 = vmatpush2.msra.mxu0 0.0
    %431 = vmatprep.subr.mxu0 0.0
    %432 = vmatpush2.msra.mxu0 0.0
    %433 = vmatprep.subr.mxu0 0.0
    %434 = vmatpush2.msra.mxu0 0.0
    %435 = vmatprep.subr.mxu0 0.0
    %436 = vmatpush2.msra.mxu0 0.0
    %437 = vmatprep.subr.mxu0 0.0
    %438 = vmatpush2.msra.mxu0 0.0
    %439 = vmatprep.subr.mxu0 0.0
    %440 = vmatpush2.msra.mxu0 0.0
    %441 = vmatprep.mubr.f32.mxu0 0.0
    %v442 = vand.u32 %v61, 4294901760
    %v443 = vsub.f32 %v61, %v442
    %v444 = vand.u32 %v443, 4294901760
    %445 = vmatmul.mubr.f32.gmra.mxu0 %v444
    %v446 = vpop.f32.mrf.mxu0
    %v447 = vadd.f32 %v351, %v446
    %v448 = vpop.f32.mrf.mxu0
    %449 = vmatprep.mubr.f32.mxu0 0.0
    %v450 = vand.u32 %v64, 4294901760
    %v451 = vsub.f32 %v64, %v450
    %v452 = vand.u32 %v451, 4294901760
    %453 = vmatmul.mubr.f32.gmra.mxu0 %v452
    %v454 = vpop.f32.mrf.mxu0
    %v455 = vadd.f32 %v358, %v454
    %v456 = vpop.f32.mrf.mxu0
    %457 = vmatprep.mubr.f32.mxu0 0.0
    %v458 = vand.u32 %v67, 4294901760
    %v459 = vsub.f32 %v67, %v458
    %v460 = vand.u32 %v459, 4294901760
    %461 = vmatmul.mubr.f32.gmra.mxu0 %v460
    %v462 = vpop.f32.mrf.mxu0
    %v463 = vadd.f32 %v365, %v462
    %v464 = vpop.f32.mrf.mxu0
    %465 = vmatprep.mubr.f32.mxu0 0.0
    %v466 = vand.u32 %v70, 4294901760
    %v467 = vsub.f32 %v70, %v466
    %v468 = vand.u32 %v467, 4294901760
    %469 = vmatmul.mubr.f32.gmra.mxu0 %v468
    %v470 = vpop.f32.mrf.mxu0
    %v471 = vadd.f32 %v372, %v470
    %v472 = vpop.f32.mrf.mxu0
    %473 = vdwg.mxu0
    %474 = vmatprep.subr.mxu0 0.0
    %475 = vmatpush1.msra.mxu0 0.0
    %476 = vmatprep.subr.mxu0 0.0
    %477 = vmatpush1.msra.mxu0 0.0
    %478 = vmatprep.subr.mxu0 0.0
    %479 = vmatpush1.msra.mxu0 0.0
    %480 = vmatprep.subr.mxu0 0.0
    %481 = vmatpush1.msra.mxu0 0.0
    %482 = vmatprep.subr.mxu0 0.0
    %483 = vmatpush1.msra.mxu0 0.0
    %484 = vmatprep.subr.mxu0 0.0
    %485 = vmatpush1.msra.mxu0 0.0
    %486 = vmatprep.subr.mxu0 0.0
    %487 = vmatpush1.msra.mxu0 0.0
    %488 = vmatprep.subr.mxu0 0.0
    %489 = vmatpush1.msra.mxu0 0.0
    %490 = vmatprep.subr.mxu0 0.0
    %491 = vmatpush1.msra.mxu0 0.0
    %492 = vmatprep.subr.mxu0 0.0
    %493 = vmatpush1.msra.mxu0 0.0
    %494 = vmatprep.subr.mxu0 0.0
    %495 = vmatpush1.msra.mxu0 0.0
    %496 = vmatprep.subr.mxu0 0.0
    %497 = vmatpush1.msra.mxu0 0.0
    %498 = vmatprep.subr.mxu0 0.0
    %499 = vmatpush1.msra.mxu0 0.0
    %500 = vmatprep.subr.mxu0 0.0
    %501 = vmatpush1.msra.mxu0 0.0
    %502 = vmatprep.subr.mxu0 0.0
    %v503 = vand.u32 %v30, 4294901760
    %v504 = vsub.f32 %v30, %v503
    %v505 = vand.u32 %v504, 4294901760
    %506 = vmatpush1.msra.mxu0 %v505
    %507 = vmatprep.subr.mxu0 0.0
    %v508 = vand.u32 %v29, 4294901760
    %v509 = vsub.f32 %v29, %v508
    %v510 = vand.u32 %v509, 4294901760
    %511 = vmatpush1.msra.mxu0 %v510
    %512 = vmatprep.subr.mxu0 0.0
    %513 = vmatpush2.msra.mxu0 0.0
    %514 = vmatprep.subr.mxu0 0.0
    %515 = vmatpush2.msra.mxu0 0.0
    %516 = vmatprep.subr.mxu0 0.0
    %517 = vmatpush2.msra.mxu0 0.0
    %518 = vmatprep.subr.mxu0 0.0
    %519 = vmatpush2.msra.mxu0 0.0
    %520 = vmatprep.subr.mxu0 0.0
    %521 = vmatpush2.msra.mxu0 0.0
    %522 = vmatprep.subr.mxu0 0.0
    %523 = vmatpush2.msra.mxu0 0.0
    %524 = vmatprep.subr.mxu0 0.0
    %525 = vmatpush2.msra.mxu0 0.0
    %526 = vmatprep.subr.mxu0 0.0
    %527 = vmatpush2.msra.mxu0 0.0
    %528 = vmatprep.subr.mxu0 0.0
    %529 = vmatpush2.msra.mxu0 0.0
    %530 = vmatprep.subr.mxu0 0.0
    %531 = vmatpush2.msra.mxu0 0.0
    %532 = vmatprep.subr.mxu0 0.0
    %533 = vmatpush2.msra.mxu0 0.0
    %534 = vmatprep.subr.mxu0 0.0
    %535 = vmatpush2.msra.mxu0 0.0
    %536 = vmatprep.subr.mxu0 0.0
    %537 = vmatpush2.msra.mxu0 0.0
    %538 = vmatprep.subr.mxu0 0.0
    %539 = vmatpush2.msra.mxu0 0.0
    %540 = vmatprep.subr.mxu0 0.0
    %541 = vmatpush2.msra.mxu0 0.0
    %542 = vmatprep.subr.mxu0 0.0
    %543 = vmatpush2.msra.mxu0 0.0
    %544 = vmatprep.mubr.f32.mxu0 0.0
    %v545 = vand.u32 %v61, 4294901760
    %546 = vmatmul.mubr.f32.gmra.mxu0 %v545
    %v547 = vpop.f32.mrf.mxu0
    %v548 = vadd.f32 %v447, %v547
    %v549 = vpop.f32.mrf.mxu0
    %550 = vmatprep.mubr.f32.mxu0 0.0
    %v551 = vand.u32 %v64, 4294901760
    %552 = vmatmul.mubr.f32.gmra.mxu0 %v551
    %v553 = vpop.f32.mrf.mxu0
    %v554 = vadd.f32 %v455, %v553
    %v555 = vpop.f32.mrf.mxu0
    %556 = vmatprep.mubr.f32.mxu0 0.0
    %v557 = vand.u32 %v67, 4294901760
    %558 = vmatmul.mubr.f32.gmra.mxu0 %v557
    %v559 = vpop.f32.mrf.mxu0
    %v560 = vadd.f32 %v463, %v559
    %v561 = vpop.f32.mrf.mxu0
    %562 = vmatprep.mubr.f32.mxu0 0.0
    %v563 = vand.u32 %v70, 4294901760
    %564 = vmatmul.mubr.f32.gmra.mxu0 %v563
    %v565 = vpop.f32.mrf.mxu0
    %v566 = vadd.f32 %v471, %v565
    %v567 = vpop.f32.mrf.mxu0
    %568 = vdwg.mxu0
    %569 = vmatprep.subr.mxu0 0.0
    %570 = vmatpush1.msra.mxu0 0.0
    %571 = vmatprep.subr.mxu0 0.0
    %572 = vmatpush1.msra.mxu0 0.0
    %573 = vmatprep.subr.mxu0 0.0
    %574 = vmatpush1.msra.mxu0 0.0
    %575 = vmatprep.subr.mxu0 0.0
    %576 = vmatpush1.msra.mxu0 0.0
    %577 = vmatprep.subr.mxu0 0.0
    %578 = vmatpush1.msra.mxu0 0.0
    %579 = vmatprep.subr.mxu0 0.0
    %580 = vmatpush1.msra.mxu0 0.0
    %581 = vmatprep.subr.mxu0 0.0
    %582 = vmatpush1.msra.mxu0 0.0
    %583 = vmatprep.subr.mxu0 0.0
    %584 = vmatpush1.msra.mxu0 0.0
    %585 = vmatprep.subr.mxu0 0.0
    %586 = vmatpush1.msra.mxu0 0.0
    %587 = vmatprep.subr.mxu0 0.0
    %588 = vmatpush1.msra.mxu0 0.0
    %589 = vmatprep.subr.mxu0 0.0
    %590 = vmatpush1.msra.mxu0 0.0
    %591 = vmatprep.subr.mxu0 0.0
    %592 = vmatpush1.msra.mxu0 0.0
    %593 = vmatprep.subr.mxu0 0.0
    %594 = vmatpush1.msra.mxu0 0.0
    %595 = vmatprep.subr.mxu0 0.0
    %596 = vmatpush1.msra.mxu0 0.0
    %597 = vmatprep.subr.mxu0 0.0
    %v598 = vand.u32 %v30, 4294901760
    %599 = vmatpush1.msra.mxu0 %v598
    %600 = vmatprep.subr.mxu0 0.0
    %v601 = vand.u32 %v29, 4294901760
    %602 = vmatpush1.msra.mxu0 %v601
    %603 = vmatprep.subr.mxu0 0.0
    %604 = vmatpush2.msra.mxu0 0.0
    %605 = vmatprep.subr.mxu0 0.0
    %606 = vmatpush2.msra.mxu0 0.0
    %607 = vmatprep.subr.mxu0 0.0
    %608 = vmatpush2.msra.mxu0 0.0
    %609 = vmatprep.subr.mxu0 0.0
    %610 = vmatpush2.msra.mxu0 0.0
    %611 = vmatprep.subr.mxu0 0.0
    %612 = vmatpush2.msra.mxu0 0.0
    %613 = vmatprep.subr.mxu0 0.0
    %614 = vmatpush2.msra.mxu0 0.0
    %615 = vmatprep.subr.mxu0 0.0
    %616 = vmatpush2.msra.mxu0 0.0
    %617 = vmatprep.subr.mxu0 0.0
    %618 = vmatpush2.msra.mxu0 0.0
    %619 = vmatprep.subr.mxu0 0.0
    %620 = vmatpush2.msra.mxu0 0.0
    %621 = vmatprep.subr.mxu0 0.0
    %622 = vmatpush2.msra.mxu0 0.0
    %623 = vmatprep.subr.mxu0 0.0
    %624 = vmatpush2.msra.mxu0 0.0
    %625 = vmatprep.subr.mxu0 0.0
    %626 = vmatpush2.msra.mxu0 0.0
    %627 = vmatprep.subr.mxu0 0.0
    %628 = vmatpush2.msra.mxu0 0.0
    %629 = vmatprep.subr.mxu0 0.0
    %630 = vmatpush2.msra.mxu0 0.0
    %631 = vmatprep.subr.mxu0 0.0
    %632 = vmatpush2.msra.mxu0 0.0
    %633 = vmatprep.subr.mxu0 0.0
    %634 = vmatpush2.msra.mxu0 0.0
    %635 = vmatprep.mubr.f32.mxu0 0.0
    %v636 = vand.u32 %v61, 4294901760
    %637 = vmatmul.mubr.f32.gmra.mxu0 %v636
    %v638 = vpop.f32.mrf.mxu0
    %v639 = vadd.f32 %v548, %v638
    %v640 = vpop.f32.mrf.mxu0
    %641 = vmatprep.mubr.f32.mxu0 0.0
    %v642 = vand.u32 %v64, 4294901760
    %643 = vmatmul.mubr.f32.gmra.mxu0 %v642
    %v644 = vpop.f32.mrf.mxu0
    %v645 = vadd.f32 %v554, %v644
    %v646 = vpop.f32.mrf.mxu0
    %647 = vmatprep.mubr.f32.mxu0 0.0
    %v648 = vand.u32 %v67, 4294901760
    %649 = vmatmul.mubr.f32.gmra.mxu0 %v648
    %v650 = vpop.f32.mrf.mxu0
    %v651 = vadd.f32 %v560, %v650
    %v652 = vpop.f32.mrf.mxu0
    %653 = vmatprep.mubr.f32.mxu0 0.0
    %v654 = vand.u32 %v70, 4294901760
    %655 = vmatmul.mubr.f32.gmra.mxu0 %v654
    %v656 = vpop.f32.mrf.mxu0
    %v657 = vadd.f32 %v566, %v656
    %v658 = vpop.f32.mrf.mxu0
    %659 = vdwg.mxu0
    %v660 = vtanh.pop %v639
    %v661 = vtanh.pop %v645
    %v662 = vtanh.pop %v651
    %v663 = vtanh.pop %v657
    %v664 = vld [vmem:[%s3] sm:$0xff]
    %v665 = vld [vmem:[%s3 + $0x8] sm:$0xff]
    %v666 = vld [vmem:[%s3 + $0x10] sm:$0xff]
    %v667 = vld [vmem:[%s3 + $0x18] sm:$0xff]
    %v668 = vld [vmem:[%s4] sm:$0xff]
    %v669 = vld [vmem:[%s4 + $0x8] sm:$0xff]
    %v670 = vld [vmem:[%s4 + $0x10] sm:$0xff]
    %v671 = vld [vmem:[%s4 + $0x18] sm:$0xff]
    %673 = vset.pattern.permute.xlu0 0
    %674 = vperm.xlu0 %673, %v668
    %v675 = vpop.permute.xlu0 %674
    %678 = vset.pattern.permute.xlu0 0
    %679 = vperm.xlu0 %678, %v669
    %v680 = vpop.permute.xlu0 %679
    %683 = vset.pattern.permute.xlu0 0
    %684 = vperm.xlu0 %683, %v670
    %v685 = vpop.permute.xlu0 %684
    %688 = vset.pattern.permute.xlu0 0
    %689 = vperm.xlu0 %688, %v671
    %v690 = vpop.permute.xlu0 %689
    %vm692 = vcmask 261120
    %v694 = vsel %vm692, %v664, 0
    %v697 = vsel %vm692, %v665, 0
    %v700 = vsel %vm692, %v666, 0
    %v703 = vsel %vm692, %v667, 0
    %705 = vmatprep.subr.mxu0 0.0
    %706 = vmatpush1.msra.mxu0 0.0
    %707 = vmatprep.subr.mxu0 0.0
    %708 = vmatpush1.msra.mxu0 0.0
    %709 = vmatprep.subr.mxu0 0.0
    %710 = vmatpush1.msra.mxu0 0.0
    %711 = vmatprep.subr.mxu0 0.0
    %712 = vmatpush1.msra.mxu0 0.0
    %713 = vmatprep.subr.mxu0 0.0
    %714 = vmatpush1.msra.mxu0 0.0
    %715 = vmatprep.subr.mxu0 0.0
    %716 = vmatpush1.msra.mxu0 0.0
    %717 = vmatprep.subr.mxu0 0.0
    %718 = vmatpush1.msra.mxu0 0.0
    %719 = vmatprep.subr.mxu0 0.0
    %720 = vmatpush1.msra.mxu0 0.0
    %721 = vmatprep.subr.mxu0 0.0
    %722 = vmatpush1.msra.mxu0 0.0
    %723 = vmatprep.subr.mxu0 0.0
    %724 = vmatpush1.msra.mxu0 0.0
    %725 = vmatprep.subr.mxu0 0.0
    %726 = vmatpush1.msra.mxu0 0.0
    %727 = vmatprep.subr.mxu0 0.0
    %728 = vmatpush1.msra.mxu0 0.0
    %729 = vmatprep.subr.mxu0 0.0
    %v730 = vand.u32 %v663, 4294901760
    %731 = vmatpush1.msra.mxu0 %v730
    %732 = vmatprep.subr.mxu0 0.0
    %v733 = vand.u32 %v662, 4294901760
    %734 = vmatpush1.msra.mxu0 %v733
    %735 = vmatprep.subr.mxu0 0.0
    %v736 = vand.u32 %v661, 4294901760
    %737 = vmatpush1.msra.mxu0 %v736
    %738 = vmatprep.subr.mxu0 0.0
    %v739 = vand.u32 %v660, 4294901760
    %740 = vmatpush1.msra.mxu0 %v739
    %741 = vmatprep.subr.mxu0 0.0
    %742 = vmatpush2.msra.mxu0 0.0
    %743 = vmatprep.subr.mxu0 0.0
    %744 = vmatpush2.msra.mxu0 0.0
    %745 = vmatprep.subr.mxu0 0.0
    %746 = vmatpush2.msra.mxu0 0.0
    %747 = vmatprep.subr.mxu0 0.0
    %748 = vmatpush2.msra.mxu0 0.0
    %749 = vmatprep.subr.mxu0 0.0
    %750 = vmatpush2.msra.mxu0 0.0
    %751 = vmatprep.subr.mxu0 0.0
    %752 = vmatpush2.msra.mxu0 0.0
    %753 = vmatprep.subr.mxu0 0.0
    %754 = vmatpush2.msra.mxu0 0.0
    %755 = vmatprep.subr.mxu0 0.0
    %756 = vmatpush2.msra.mxu0 0.0
    %757 = vmatprep.subr.mxu0 0.0
    %758 = vmatpush2.msra.mxu0 0.0
    %759 = vmatprep.subr.mxu0 0.0
    %760 = vmatpush2.msra.mxu0 0.0
    %761 = vmatprep.subr.mxu0 0.0
    %762 = vmatpush2.msra.mxu0 0.0
    %763 = vmatprep.subr.mxu0 0.0
    %764 = vmatpush2.msra.mxu0 0.0
    %765 = vmatprep.subr.mxu0 0.0
    %766 = vmatpush2.msra.mxu0 0.0
    %767 = vmatprep.subr.mxu0 0.0
    %768 = vmatpush2.msra.mxu0 0.0
    %769 = vmatprep.subr.mxu0 0.0
    %770 = vmatpush2.msra.mxu0 0.0
    %771 = vmatprep.subr.mxu0 0.0
    %772 = vmatpush2.msra.mxu0 0.0
    %773 = vmatprep.mubr.f32.mxu0 0.0
    %v774 = vand.u32 %v694, 4294901760
    %v775 = vsub.f32 %v694, %v774
    %v776 = vand.u32 %v775, 4294901760
    %v777 = vsub.f32 %v775, %v776
    %v778 = vand.u32 %v777, 4294901760
    %779 = vmatmul.mubr.f32.gmra.mxu0 %v778
    %v780 = vpop.f32.mrf.mxu0
    %v781 = vadd.f32 %v675, %v780
    %v782 = vpop.f32.mrf.mxu0
    %783 = vmatprep.mubr.f32.mxu0 0.0
    %v784 = vand.u32 %v697, 4294901760
    %v785 = vsub.f32 %v697, %v784
    %v786 = vand.u32 %v785, 4294901760
    %v787 = vsub.f32 %v785, %v786
    %v788 = vand.u32 %v787, 4294901760
    %789 = vmatmul.mubr.f32.gmra.mxu0 %v788
    %v790 = vpop.f32.mrf.mxu0
    %v791 = vadd.f32 %v680, %v790
    %v792 = vpop.f32.mrf.mxu0
    %793 = vmatprep.mubr.f32.mxu0 0.0
    %v794 = vand.u32 %v700, 4294901760
    %v795 = vsub.f32 %v700, %v794
    %v796 = vand.u32 %v795, 4294901760
    %v797 = vsub.f32 %v795, %v796
    %v798 = vand.u32 %v797, 4294901760
    %799 = vmatmul.mubr.f32.gmra.mxu0 %v798
    %v800 = vpop.f32.mrf.mxu0
    %v801 = vadd.f32 %v685, %v800
    %v802 = vpop.f32.mrf.mxu0
    %803 = vmatprep.mubr.f32.mxu0 0.0
    %v804 = vand.u32 %v703, 4294901760
    %v805 = vsub.f32 %v703, %v804
    %v806 = vand.u32 %v805, 4294901760
    %v807 = vsub.f32 %v805, %v806
    %v808 = vand.u32 %v807, 4294901760
    %809 = vmatmul.mubr.f32.gmra.mxu0 %v808
    %v810 = vpop.f32.mrf.mxu0
    %v811 = vadd.f32 %v690, %v810
    %v812 = vpop.f32.mrf.mxu0
    %813 = vdwg.mxu0
    %814 = vmatprep.subr.mxu0 0.0
    %815 = vmatpush1.msra.mxu0 0.0
    %816 = vmatprep.subr.mxu0 0.0
    %817 = vmatpush1.msra.mxu0 0.0
    %818 = vmatprep.subr.mxu0 0.0
    %819 = vmatpush1.msra.mxu0 0.0
    %820 = vmatprep.subr.mxu0 0.0
    %821 = vmatpush1.msra.mxu0 0.0
    %822 = vmatprep.subr.mxu0 0.0
    %823 = vmatpush1.msra.mxu0 0.0
    %824 = vmatprep.subr.mxu0 0.0
    %825 = vmatpush1.msra.mxu0 0.0
    %826 = vmatprep.subr.mxu0 0.0
    %827 = vmatpush1.msra.mxu0 0.0
    %828 = vmatprep.subr.mxu0 0.0
    %829 = vmatpush1.msra.mxu0 0.0
    %830 = vmatprep.subr.mxu0 0.0
    %831 = vmatpush1.msra.mxu0 0.0
    %832 = vmatprep.subr.mxu0 0.0
    %833 = vmatpush1.msra.mxu0 0.0
    %834 = vmatprep.subr.mxu0 0.0
    %835 = vmatpush1.msra.mxu0 0.0
    %836 = vmatprep.subr.mxu0 0.0
    %837 = vmatpush1.msra.mxu0 0.0
    %838 = vmatprep.subr.mxu0 0.0
    %v839 = vand.u32 %v663, 4294901760
    %v840 = vsub.f32 %v663, %v839
    %v841 = vand.u32 %v840, 4294901760
    %v842 = vsub.f32 %v840, %v841
    %v843 = vand.u32 %v842, 4294901760
    %844 = vmatpush1.msra.mxu0 %v843
    %845 = vmatprep.subr.mxu0 0.0
    %v846 = vand.u32 %v662, 4294901760
    %v847 = vsub.f32 %v662, %v846
    %v848 = vand.u32 %v847, 4294901760
    %v849 = vsub.f32 %v847, %v848
    %v850 = vand.u32 %v849, 4294901760
    %851 = vmatpush1.msra.mxu0 %v850
    %852 = vmatprep.subr.mxu0 0.0
    %v853 = vand.u32 %v661, 4294901760
    %v854 = vsub.f32 %v661, %v853
    %v855 = vand.u32 %v854, 4294901760
    %v856 = vsub.f32 %v854, %v855
    %v857 = vand.u32 %v856, 4294901760
    %858 = vmatpush1.msra.mxu0 %v857
    %859 = vmatprep.subr.mxu0 0.0
    %v860 = vand.u32 %v660, 4294901760
    %v861 = vsub.f32 %v660, %v860
    %v862 = vand.u32 %v861, 4294901760
    %v863 = vsub.f32 %v861, %v862
    %v864 = vand.u32 %v863, 4294901760
    %865 = vmatpush1.msra.mxu0 %v864
    %866 = vmatprep.subr.mxu0 0.0
    %867 = vmatpush2.msra.mxu0 0.0
    %868 = vmatprep.subr.mxu0 0.0
    %869 = vmatpush2.msra.mxu0 0.0
    %870 = vmatprep.subr.mxu0 0.0
    %871 = vmatpush2.msra.mxu0 0.0
    %872 = vmatprep.subr.mxu0 0.0
    %873 = vmatpush2.msra.mxu0 0.0
    %874 = vmatprep.subr.mxu0 0.0
    %875 = vmatpush2.msra.mxu0 0.0
    %876 = vmatprep.subr.mxu0 0.0
    %877 = vmatpush2.msra.mxu0 0.0
    %878 = vmatprep.subr.mxu0 0.0
    %879 = vmatpush2.msra.mxu0 0.0
    %880 = vmatprep.subr.mxu0 0.0
    %881 = vmatpush2.msra.mxu0 0.0
    %882 = vmatprep.subr.mxu0 0.0
    %883 = vmatpush2.msra.mxu0 0.0
    %884 = vmatprep.subr.mxu0 0.0
    %885 = vmatpush2.msra.mxu0 0.0
    %886 = vmatprep.subr.mxu0 0.0
    %887 = vmatpush2.msra.mxu0 0.0
    %888 = vmatprep.subr.mxu0 0.0
    %889 = vmatpush2.msra.mxu0 0.0
    %890 = vmatprep.subr.mxu0 0.0
    %891 = vmatpush2.msra.mxu0 0.0
    %892 = vmatprep.subr.mxu0 0.0
    %893 = vmatpush2.msra.mxu0 0.0
    %894 = vmatprep.subr.mxu0 0.0
    %895 = vmatpush2.msra.mxu0 0.0
    %896 = vmatprep.subr.mxu0 0.0
    %897 = vmatpush2.msra.mxu0 0.0
    %898 = vmatprep.mubr.f32.mxu0 0.0
    %v899 = vand.u32 %v694, 4294901760
    %900 = vmatmul.mubr.f32.gmra.mxu0 %v899
    %v901 = vpop.f32.mrf.mxu0
    %v902 = vadd.f32 %v781, %v901
    %v903 = vpop.f32.mrf.mxu0
    %904 = vmatprep.mubr.f32.mxu0 0.0
    %v905 = vand.u32 %v697, 4294901760
    %906 = vmatmul.mubr.f32.gmra.mxu0 %v905
    %v907 = vpop.f32.mrf.mxu0
    %v908 = vadd.f32 %v791, %v907
    %v909 = vpop.f32.mrf.mxu0
    %910 = vmatprep.mubr.f32.mxu0 0.0
    %v911 = vand.u32 %v700, 4294901760
    %912 = vmatmul.mubr.f32.gmra.mxu0 %v911
    %v913 = vpop.f32.mrf.mxu0
    %v914 = vadd.f32 %v801, %v913
    %v915 = vpop.f32.mrf.mxu0
    %916 = vmatprep.mubr.f32.mxu0 0.0
    %v917 = vand.u32 %v703, 4294901760
    %918 = vmatmul.mubr.f32.gmra.mxu0 %v917
    %v919 = vpop.f32.mrf.mxu0
    %v920 = vadd.f32 %v811, %v919
    %v921 = vpop.f32.mrf.mxu0
    %922 = vdwg.mxu0
    %923 = vmatprep.subr.mxu0 0.0
    %924 = vmatpush1.msra.mxu0 0.0
    %925 = vmatprep.subr.mxu0 0.0
    %926 = vmatpush1.msra.mxu0 0.0
    %927 = vmatprep.subr.mxu0 0.0
    %928 = vmatpush1.msra.mxu0 0.0
    %929 = vmatprep.subr.mxu0 0.0
    %930 = vmatpush1.msra.mxu0 0.0
    %931 = vmatprep.subr.mxu0 0.0
    %932 = vmatpush1.msra.mxu0 0.0
    %933 = vmatprep.subr.mxu0 0.0
    %934 = vmatpush1.msra.mxu0 0.0
    %935 = vmatprep.subr.mxu0 0.0
    %936 = vmatpush1.msra.mxu0 0.0
    %937 = vmatprep.subr.mxu0 0.0
    %938 = vmatpush1.msra.mxu0 0.0
    %939 = vmatprep.subr.mxu0 0.0
    %940 = vmatpush1.msra.mxu0 0.0
    %941 = vmatprep.subr.mxu0 0.0
    %942 = vmatpush1.msra.mxu0 0.0
    %943 = vmatprep.subr.mxu0 0.0
    %944 = vmatpush1.msra.mxu0 0.0
    %945 = vmatprep.subr.mxu0 0.0
    %946 = vmatpush1.msra.mxu0 0.0
    %947 = vmatprep.subr.mxu0 0.0
    %v948 = vand.u32 %v663, 4294901760
    %v949 = vsub.f32 %v663, %v948
    %950 = vmatpush1.msra.mxu0 %v949
    %951 = vmatprep.subr.mxu0 0.0
    %v952 = vand.u32 %v662, 4294901760
    %v953 = vsub.f32 %v662, %v952
    %954 = vmatpush1.msra.mxu0 %v953
    %955 = vmatprep.subr.mxu0 0.0
    %v956 = vand.u32 %v661, 4294901760
    %v957 = vsub.f32 %v661, %v956
    %958 = vmatpush1.msra.mxu0 %v957
    %959 = vmatprep.subr.mxu0 0.0
    %v960 = vand.u32 %v660, 4294901760
    %v961 = vsub.f32 %v660, %v960
    %962 = vmatpush1.msra.mxu0 %v961
    %963 = vmatprep.subr.mxu0 0.0
    %964 = vmatpush2.msra.mxu0 0.0
    %965 = vmatprep.subr.mxu0 0.0
    %966 = vmatpush2.msra.mxu0 0.0
    %967 = vmatprep.subr.mxu0 0.0
    %968 = vmatpush2.msra.mxu0 0.0
    %969 = vmatprep.subr.mxu0 0.0
    %970 = vmatpush2.msra.mxu0 0.0
    %971 = vmatprep.subr.mxu0 0.0
    %972 = vmatpush2.msra.mxu0 0.0
    %973 = vmatprep.subr.mxu0 0.0
    %974 = vmatpush2.msra.mxu0 0.0
    %975 = vmatprep.subr.mxu0 0.0
    %976 = vmatpush2.msra.mxu0 0.0
    %977 = vmatprep.subr.mxu0 0.0
    %978 = vmatpush2.msra.mxu0 0.0
    %979 = vmatprep.subr.mxu0 0.0
    %980 = vmatpush2.msra.mxu0 0.0
    %981 = vmatprep.subr.mxu0 0.0
    %982 = vmatpush2.msra.mxu0 0.0
    %983 = vmatprep.subr.mxu0 0.0
    %984 = vmatpush2.msra.mxu0 0.0
    %985 = vmatprep.subr.mxu0 0.0
    %986 = vmatpush2.msra.mxu0 0.0
    %987 = vmatprep.subr.mxu0 0.0
    %988 = vmatpush2.msra.mxu0 0.0
    %989 = vmatprep.subr.mxu0 0.0
    %990 = vmatpush2.msra.mxu0 0.0
    %991 = vmatprep.subr.mxu0 0.0
    %992 = vmatpush2.msra.mxu0 0.0
    %993 = vmatprep.subr.mxu0 0.0
    %994 = vmatpush2.msra.mxu0 0.0
    %995 = vmatprep.mubr.f32.mxu0 0.0
    %v996 = vand.u32 %v694, 4294901760
    %v997 = vsub.f32 %v694, %v996
    %998 = vmatmul.mubr.f32.gmra.mxu0 %v997
    %v999 = vpop.f32.mrf.mxu0
    %v1000 = vadd.f32 %v902, %v999
    %v1001 = vpop.f32.mrf.mxu0
    %1002 = vmatprep.mubr.f32.mxu0 0.0
    %v1003 = vand.u32 %v697, 4294901760
    %v1004 = vsub.f32 %v697, %v1003
    %1005 = vmatmul.mubr.f32.gmra.mxu0 %v1004
    %v1006 = vpop.f32.mrf.mxu0
    %v1007 = vadd.f32 %v908, %v1006
    %v1008 = vpop.f32.mrf.mxu0
    %1009 = vmatprep.mubr.f32.mxu0 0.0
    %v1010 = vand.u32 %v700, 4294901760
    %v1011 = vsub.f32 %v700, %v1010
    %1012 = vmatmul.mubr.f32.gmra.mxu0 %v1011
    %v1013 = vpop.f32.mrf.mxu0
    %v1014 = vadd.f32 %v914, %v1013
    %v1015 = vpop.f32.mrf.mxu0
    %1016 = vmatprep.mubr.f32.mxu0 0.0
    %v1017 = vand.u32 %v703, 4294901760
    %v1018 = vsub.f32 %v703, %v1017
    %1019 = vmatmul.mubr.f32.gmra.mxu0 %v1018
    %v1020 = vpop.f32.mrf.mxu0
    %v1021 = vadd.f32 %v920, %v1020
    %v1022 = vpop.f32.mrf.mxu0
    %1023 = vdwg.mxu0
    %1024 = vmatprep.subr.mxu0 0.0
    %1025 = vmatpush1.msra.mxu0 0.0
    %1026 = vmatprep.subr.mxu0 0.0
    %1027 = vmatpush1.msra.mxu0 0.0
    %1028 = vmatprep.subr.mxu0 0.0
    %1029 = vmatpush1.msra.mxu0 0.0
    %1030 = vmatprep.subr.mxu0 0.0
    %1031 = vmatpush1.msra.mxu0 0.0
    %1032 = vmatprep.subr.mxu0 0.0
    %1033 = vmatpush1.msra.mxu0 0.0
    %1034 = vmatprep.subr.mxu0 0.0
    %1035 = vmatpush1.msra.mxu0 0.0
    %1036 = vmatprep.subr.mxu0 0.0
    %1037 = vmatpush1.msra.mxu0 0.0
    %1038 = vmatprep.subr.mxu0 0.0
    %1039 = vmatpush1.msra.mxu0 0.0
    %1040 = vmatprep.subr.mxu0 0.0
    %1041 = vmatpush1.msra.mxu0 0.0
    %1042 = vmatprep.subr.mxu0 0.0
    %1043 = vmatpush1.msra.mxu0 0.0
    %1044 = vmatprep.subr.mxu0 0.0
    %1045 = vmatpush1.msra.mxu0 0.0
    %1046 = vmatprep.subr.mxu0 0.0
    %1047 = vmatpush1.msra.mxu0 0.0
    %1048 = vmatprep.subr.mxu0 0.0
    %v1049 = vand.u32 %v663, 4294901760
    %1050 = vmatpush1.msra.mxu0 %v1049
    %1051 = vmatprep.subr.mxu0 0.0
    %v1052 = vand.u32 %v662, 4294901760
    %1053 = vmatpush1.msra.mxu0 %v1052
    %1054 = vmatprep.subr.mxu0 0.0
    %v1055 = vand.u32 %v661, 4294901760
    %1056 = vmatpush1.msra.mxu0 %v1055
    %1057 = vmatprep.subr.mxu0 0.0
    %v1058 = vand.u32 %v660, 4294901760
    %1059 = vmatpush1.msra.mxu0 %v1058
    %1060 = vmatprep.subr.mxu0 0.0
    %1061 = vmatpush2.msra.mxu0 0.0
    %1062 = vmatprep.subr.mxu0 0.0
    %1063 = vmatpush2.msra.mxu0 0.0
    %1064 = vmatprep.subr.mxu0 0.0
    %1065 = vmatpush2.msra.mxu0 0.0
    %1066 = vmatprep.subr.mxu0 0.0
    %1067 = vmatpush2.msra.mxu0 0.0
    %1068 = vmatprep.subr.mxu0 0.0
    %1069 = vmatpush2.msra.mxu0 0.0
    %1070 = vmatprep.subr.mxu0 0.0
    %1071 = vmatpush2.msra.mxu0 0.0
    %1072 = vmatprep.subr.mxu0 0.0
    %1073 = vmatpush2.msra.mxu0 0.0
    %1074 = vmatprep.subr.mxu0 0.0
    %1075 = vmatpush2.msra.mxu0 0.0
    %1076 = vmatprep.subr.mxu0 0.0
    %1077 = vmatpush2.msra.mxu0 0.0
    %1078 = vmatprep.subr.mxu0 0.0
    %1079 = vmatpush2.msra.mxu0 0.0
    %1080 = vmatprep.subr.mxu0 0.0
    %1081 = vmatpush2.msra.mxu0 0.0
    %1082 = vmatprep.subr.mxu0 0.0
    %1083 = vmatpush2.msra.mxu0 0.0
    %1084 = vmatprep.subr.mxu0 0.0
    %1085 = vmatpush2.msra.mxu0 0.0
    %1086 = vmatprep.subr.mxu0 0.0
    %1087 = vmatpush2.msra.mxu0 0.0
    %1088 = vmatprep.subr.mxu0 0.0
    %1089 = vmatpush2.msra.mxu0 0.0
    %1090 = vmatprep.subr.mxu0 0.0
    %1091 = vmatpush2.msra.mxu0 0.0
    %1092 = vmatprep.mubr.f32.mxu0 0.0
    %v1093 = vand.u32 %v694, 4294901760
    %v1094 = vsub.f32 %v694, %v1093
    %v1095 = vand.u32 %v1094, 4294901760
    %1096 = vmatmul.mubr.f32.gmra.mxu0 %v1095
    %v1097 = vpop.f32.mrf.mxu0
    %v1098 = vadd.f32 %v1000, %v1097
    %v1099 = vpop.f32.mrf.mxu0
    %1100 = vmatprep.mubr.f32.mxu0 0.0
    %v1101 = vand.u32 %v697, 4294901760
    %v1102 = vsub.f32 %v697, %v1101
    %v1103 = vand.u32 %v1102, 4294901760
    %1104 = vmatmul.mubr.f32.gmra.mxu0 %v1103
    %v1105 = vpop.f32.mrf.mxu0
    %v1106 = vadd.f32 %v1007, %v1105
    %v1107 = vpop.f32.mrf.mxu0
    %1108 = vmatprep.mubr.f32.mxu0 0.0
    %v1109 = vand.u32 %v700, 4294901760
    %v1110 = vsub.f32 %v700, %v1109
    %v1111 = vand.u32 %v1110, 4294901760
    %1112 = vmatmul.mubr.f32.gmra.mxu0 %v1111
    %v1113 = vpop.f32.mrf.mxu0
    %v1114 = vadd.f32 %v1014, %v1113
    %v1115 = vpop.f32.mrf.mxu0
    %1116 = vmatprep.mubr.f32.mxu0 0.0
    %v1117 = vand.u32 %v703, 4294901760
    %v1118 = vsub.f32 %v703, %v1117
    %v1119 = vand.u32 %v1118, 4294901760
    %1120 = vmatmul.mubr.f32.gmra.mxu0 %v1119
    %v1121 = vpop.f32.mrf.mxu0
    %v1122 = vadd.f32 %v1021, %v1121
    %v1123 = vpop.f32.mrf.mxu0
    %1124 = vdwg.mxu0
    %1125 = vmatprep.subr.mxu0 0.0
    %1126 = vmatpush1.msra.mxu0 0.0
    %1127 = vmatprep.subr.mxu0 0.0
    %1128 = vmatpush1.msra.mxu0 0.0
    %1129 = vmatprep.subr.mxu0 0.0
    %1130 = vmatpush1.msra.mxu0 0.0
    %1131 = vmatprep.subr.mxu0 0.0
    %1132 = vmatpush1.msra.mxu0 0.0
    %1133 = vmatprep.subr.mxu0 0.0
    %1134 = vmatpush1.msra.mxu0 0.0
    %1135 = vmatprep.subr.mxu0 0.0
    %1136 = vmatpush1.msra.mxu0 0.0
    %1137 = vmatprep.subr.mxu0 0.0
    %1138 = vmatpush1.msra.mxu0 0.0
    %1139 = vmatprep.subr.mxu0 0.0
    %1140 = vmatpush1.msra.mxu0 0.0
    %1141 = vmatprep.subr.mxu0 0.0
    %1142 = vmatpush1.msra.mxu0 0.0
    %1143 = vmatprep.subr.mxu0 0.0
    %1144 = vmatpush1.msra.mxu0 0.0
    %1145 = vmatprep.subr.mxu0 0.0
    %1146 = vmatpush1.msra.mxu0 0.0
    %1147 = vmatprep.subr.mxu0 0.0
    %1148 = vmatpush1.msra.mxu0 0.0
    %1149 = vmatprep.subr.mxu0 0.0
    %v1150 = vand.u32 %v663, 4294901760
    %v1151 = vsub.f32 %v663, %v1150
    %v1152 = vand.u32 %v1151, 4294901760
    %1153 = vmatpush1.msra.mxu0 %v1152
    %1154 = vmatprep.subr.mxu0 0.0
    %v1155 = vand.u32 %v662, 4294901760
    %v1156 = vsub.f32 %v662, %v1155
    %v1157 = vand.u32 %v1156, 4294901760
    %1158 = vmatpush1.msra.mxu0 %v1157
    %1159 = vmatprep.subr.mxu0 0.0
    %v1160 = vand.u32 %v661, 4294901760
    %v1161 = vsub.f32 %v661, %v1160
    %v1162 = vand.u32 %v1161, 4294901760
    %1163 = vmatpush1.msra.mxu0 %v1162
    %1164 = vmatprep.subr.mxu0 0.0
    %v1165 = vand.u32 %v660, 4294901760
    %v1166 = vsub.f32 %v660, %v1165
    %v1167 = vand.u32 %v1166, 4294901760
    %1168 = vmatpush1.msra.mxu0 %v1167
    %1169 = vmatprep.subr.mxu0 0.0
    %1170 = vmatpush2.msra.mxu0 0.0
    %1171 = vmatprep.subr.mxu0 0.0
    %1172 = vmatpush2.msra.mxu0 0.0
    %1173 = vmatprep.subr.mxu0 0.0
    %1174 = vmatpush2.msra.mxu0 0.0
    %1175 = vmatprep.subr.mxu0 0.0
    %1176 = vmatpush2.msra.mxu0 0.0
    %1177 = vmatprep.subr.mxu0 0.0
    %1178 = vmatpush2.msra.mxu0 0.0
    %1179 = vmatprep.subr.mxu0 0.0
    %1180 = vmatpush2.msra.mxu0 0.0
    %1181 = vmatprep.subr.mxu0 0.0
    %1182 = vmatpush2.msra.mxu0 0.0
    %1183 = vmatprep.subr.mxu0 0.0
    %1184 = vmatpush2.msra.mxu0 0.0
    %1185 = vmatprep.subr.mxu0 0.0
    %1186 = vmatpush2.msra.mxu0 0.0
    %1187 = vmatprep.subr.mxu0 0.0
    %1188 = vmatpush2.msra.mxu0 0.0
    %1189 = vmatprep.subr.mxu0 0.0
    %1190 = vmatpush2.msra.mxu0 0.0
    %1191 = vmatprep.subr.mxu0 0.0
    %1192 = vmatpush2.msra.mxu0 0.0
    %1193 = vmatprep.subr.mxu0 0.0
    %1194 = vmatpush2.msra.mxu0 0.0
    %1195 = vmatprep.subr.mxu0 0.0
    %1196 = vmatpush2.msra.mxu0 0.0
    %1197 = vmatprep.subr.mxu0 0.0
    %1198 = vmatpush2.msra.mxu0 0.0
    %1199 = vmatprep.subr.mxu0 0.0
    %1200 = vmatpush2.msra.mxu0 0.0
    %1201 = vmatprep.mubr.f32.mxu0 0.0
    %v1202 = vand.u32 %v694, 4294901760
    %1203 = vmatmul.mubr.f32.gmra.mxu0 %v1202
    %v1204 = vpop.f32.mrf.mxu0
    %v1205 = vadd.f32 %v1098, %v1204
    %v1206 = vpop.f32.mrf.mxu0
    %1207 = vmatprep.mubr.f32.mxu0 0.0
    %v1208 = vand.u32 %v697, 4294901760
    %1209 = vmatmul.mubr.f32.gmra.mxu0 %v1208
    %v1210 = vpop.f32.mrf.mxu0
    %v1211 = vadd.f32 %v1106, %v1210
    %v1212 = vpop.f32.mrf.mxu0
    %1213 = vmatprep.mubr.f32.mxu0 0.0
    %v1214 = vand.u32 %v700, 4294901760
    %1215 = vmatmul.mubr.f32.gmra.mxu0 %v1214
    %v1216 = vpop.f32.mrf.mxu0
    %v1217 = vadd.f32 %v1114, %v1216
    %v1218 = vpop.f32.mrf.mxu0
    %1219 = vmatprep.mubr.f32.mxu0 0.0
    %v1220 = vand.u32 %v703, 4294901760
    %1221 = vmatmul.mubr.f32.gmra.mxu0 %v1220
    %v1222 = vpop.f32.mrf.mxu0
    %v1223 = vadd.f32 %v1122, %v1222
    %v1224 = vpop.f32.mrf.mxu0
    %1225 = vdwg.mxu0
    %1226 = vmatprep.subr.mxu0 0.0
    %1227 = vmatpush1.msra.mxu0 0.0
    %1228 = vmatprep.subr.mxu0 0.0
    %1229 = vmatpush1.msra.mxu0 0.0
    %1230 = vmatprep.subr.mxu0 0.0
    %1231 = vmatpush1.msra.mxu0 0.0
    %1232 = vmatprep.subr.mxu0 0.0
    %1233 = vmatpush1.msra.mxu0 0.0
    %1234 = vmatprep.subr.mxu0 0.0
    %1235 = vmatpush1.msra.mxu0 0.0
    %1236 = vmatprep.subr.mxu0 0.0
    %1237 = vmatpush1.msra.mxu0 0.0
    %1238 = vmatprep.subr.mxu0 0.0
    %1239 = vmatpush1.msra.mxu0 0.0
    %1240 = vmatprep.subr.mxu0 0.0
    %1241 = vmatpush1.msra.mxu0 0.0
    %1242 = vmatprep.subr.mxu0 0.0
    %1243 = vmatpush1.msra.mxu0 0.0
    %1244 = vmatprep.subr.mxu0 0.0
    %1245 = vmatpush1.msra.mxu0 0.0
    %1246 = vmatprep.subr.mxu0 0.0
    %1247 = vmatpush1.msra.mxu0 0.0
    %1248 = vmatprep.subr.mxu0 0.0
    %1249 = vmatpush1.msra.mxu0 0.0
    %1250 = vmatprep.subr.mxu0 0.0
    %v1251 = vand.u32 %v663, 4294901760
    %1252 = vmatpush1.msra.mxu0 %v1251
    %1253 = vmatprep.subr.mxu0 0.0
    %v1254 = vand.u32 %v662, 4294901760
    %1255 = vmatpush1.msra.mxu0 %v1254
    %1256 = vmatprep.subr.mxu0 0.0
    %v1257 = vand.u32 %v661, 4294901760
    %1258 = vmatpush1.msra.mxu0 %v1257
    %1259 = vmatprep.subr.mxu0 0.0
    %v1260 = vand.u32 %v660, 4294901760
    %1261 = vmatpush1.msra.mxu0 %v1260
    %1262 = vmatprep.subr.mxu0 0.0
    %1263 = vmatpush2.msra.mxu0 0.0
    %1264 = vmatprep.subr.mxu0 0.0
    %1265 = vmatpush2.msra.mxu0 0.0
    %1266 = vmatprep.subr.mxu0 0.0
    %1267 = vmatpush2.msra.mxu0 0.0
    %1268 = vmatprep.subr.mxu0 0.0
    %1269 = vmatpush2.msra.mxu0 0.0
    %1270 = vmatprep.subr.mxu0 0.0
    %1271 = vmatpush2.msra.mxu0 0.0
    %1272 = vmatprep.subr.mxu0 0.0
    %1273 = vmatpush2.msra.mxu0 0.0
    %1274 = vmatprep.subr.mxu0 0.0
    %1275 = vmatpush2.msra.mxu0 0.0
    %1276 = vmatprep.subr.mxu0 0.0
    %1277 = vmatpush2.msra.mxu0 0.0
    %1278 = vmatprep.subr.mxu0 0.0
    %1279 = vmatpush2.msra.mxu0 0.0
    %1280 = vmatprep.subr.mxu0 0.0
    %1281 = vmatpush2.msra.mxu0 0.0
    %1282 = vmatprep.subr.mxu0 0.0
    %1283 = vmatpush2.msra.mxu0 0.0
    %1284 = vmatprep.subr.mxu0 0.0
    %1285 = vmatpush2.msra.mxu0 0.0
    %1286 = vmatprep.subr.mxu0 0.0
    %1287 = vmatpush2.msra.mxu0 0.0
    %1288 = vmatprep.subr.mxu0 0.0
    %1289 = vmatpush2.msra.mxu0 0.0
    %1290 = vmatprep.subr.mxu0 0.0
    %1291 = vmatpush2.msra.mxu0 0.0
    %1292 = vmatprep.subr.mxu0 0.0
    %1293 = vmatpush2.msra.mxu0 0.0
    %1294 = vmatprep.mubr.f32.mxu0 0.0
    %v1295 = vand.u32 %v694, 4294901760
    %1296 = vmatmul.mubr.f32.gmra.mxu0 %v1295
    %v1297 = vpop.f32.mrf.mxu0
    %v1298 = vadd.f32 %v1205, %v1297
    %v1299 = vpop.f32.mrf.mxu0
    %1300 = vmatprep.mubr.f32.mxu0 0.0
    %v1301 = vand.u32 %v697, 4294901760
    %1302 = vmatmul.mubr.f32.gmra.mxu0 %v1301
    %v1303 = vpop.f32.mrf.mxu0
    %v1304 = vadd.f32 %v1211, %v1303
    %v1305 = vpop.f32.mrf.mxu0
    %1306 = vmatprep.mubr.f32.mxu0 0.0
    %v1307 = vand.u32 %v700, 4294901760
    %1308 = vmatmul.mubr.f32.gmra.mxu0 %v1307
    %v1309 = vpop.f32.mrf.mxu0
    %v1310 = vadd.f32 %v1217, %v1309
    %v1311 = vpop.f32.mrf.mxu0
    %1312 = vmatprep.mubr.f32.mxu0 0.0
    %v1313 = vand.u32 %v703, 4294901760
    %1314 = vmatmul.mubr.f32.gmra.mxu0 %v1313
    %v1315 = vpop.f32.mrf.mxu0
    %v1316 = vadd.f32 %v1223, %v1315
    %v1317 = vpop.f32.mrf.mxu0
    %1318 = vdwg.mxu0
    %v1319 = vtanh.pop %v1298
    %v1320 = vtanh.pop %v1304
    %v1321 = vtanh.pop %v1310
    %v1322 = vtanh.pop %v1316
    %v1323 = vld [vmem:[%s5] sm:$0x1]
    %v1324 = vld [vmem:[#allocation2] sm:$0x1]
    %1326 = vset.pattern.permute.xlu0 0
    %1327 = vperm.xlu0 %1326, %v1324
    %v1328 = vpop.permute.xlu0 %1327
    %v1330 = vlaneseq
    %v1331 = vshrl.u32 %v1330, 7
    %v1332 = vsub.s32 0, %v1331
    %v1333 = vrot.slane %v1328, %v1332
    %v1335 = vsel %vm692, %v1323, 0
    %1337 = vmatprep.subr.mxu0 0.0
    %1338 = vmatpush1.msra.mxu0 0.0
    %1339 = vmatprep.subr.mxu0 0.0
    %1340 = vmatpush1.msra.mxu0 0.0
    %1341 = vmatprep.subr.mxu0 0.0
    %1342 = vmatpush1.msra.mxu0 0.0
    %1343 = vmatprep.subr.mxu0 0.0
    %1344 = vmatpush1.msra.mxu0 0.0
    %1345 = vmatprep.subr.mxu0 0.0
    %1346 = vmatpush1.msra.mxu0 0.0
    %1347 = vmatprep.subr.mxu0 0.0
    %1348 = vmatpush1.msra.mxu0 0.0
    %1349 = vmatprep.subr.mxu0 0.0
    %1350 = vmatpush1.msra.mxu0 0.0
    %1351 = vmatprep.subr.mxu0 0.0
    %1352 = vmatpush1.msra.mxu0 0.0
    %1353 = vmatprep.subr.mxu0 0.0
    %1354 = vmatpush1.msra.mxu0 0.0
    %1355 = vmatprep.subr.mxu0 0.0
    %1356 = vmatpush1.msra.mxu0 0.0
    %1357 = vmatprep.subr.mxu0 0.0
    %1358 = vmatpush1.msra.mxu0 0.0
    %1359 = vmatprep.subr.mxu0 0.0
    %1360 = vmatpush1.msra.mxu0 0.0
    %1361 = vmatprep.subr.mxu0 0.0
    %v1362 = vand.u32 %v1322, 4294901760
    %1363 = vmatpush1.msra.mxu0 %v1362
    %1364 = vmatprep.subr.mxu0 0.0
    %v1365 = vand.u32 %v1321, 4294901760
    %1366 = vmatpush1.msra.mxu0 %v1365
    %1367 = vmatprep.subr.mxu0 0.0
    %v1368 = vand.u32 %v1320, 4294901760
    %1369 = vmatpush1.msra.mxu0 %v1368
    %1370 = vmatprep.subr.mxu0 0.0
    %v1371 = vand.u32 %v1319, 4294901760
    %1372 = vmatpush1.msra.mxu0 %v1371
    %1373 = vmatprep.subr.mxu0 0.0
    %1374 = vmatpush2.msra.mxu0 0.0
    %1375 = vmatprep.subr.mxu0 0.0
    %1376 = vmatpush2.msra.mxu0 0.0
    %1377 = vmatprep.subr.mxu0 0.0
    %1378 = vmatpush2.msra.mxu0 0.0
    %1379 = vmatprep.subr.mxu0 0.0
    %1380 = vmatpush2.msra.mxu0 0.0
    %1381 = vmatprep.subr.mxu0 0.0
    %1382 = vmatpush2.msra.mxu0 0.0
    %1383 = vmatprep.subr.mxu0 0.0
    %1384 = vmatpush2.msra.mxu0 0.0
    %1385 = vmatprep.subr.mxu0 0.0
    %1386 = vmatpush2.msra.mxu0 0.0
    %1387 = vmatprep.subr.mxu0 0.0
    %1388 = vmatpush2.msra.mxu0 0.0
    %1389 = vmatprep.subr.mxu0 0.0
    %1390 = vmatpush2.msra.mxu0 0.0
    %1391 = vmatprep.subr.mxu0 0.0
    %1392 = vmatpush2.msra.mxu0 0.0
    %1393 = vmatprep.subr.mxu0 0.0
    %1394 = vmatpush2.msra.mxu0 0.0
    %1395 = vmatprep.subr.mxu0 0.0
    %1396 = vmatpush2.msra.mxu0 0.0
    %1397 = vmatprep.subr.mxu0 0.0
    %1398 = vmatpush2.msra.mxu0 0.0
    %1399 = vmatprep.subr.mxu0 0.0
    %1400 = vmatpush2.msra.mxu0 0.0
    %1401 = vmatprep.subr.mxu0 0.0
    %1402 = vmatpush2.msra.mxu0 0.0
    %1403 = vmatprep.subr.mxu0 0.0
    %1404 = vmatpush2.msra.mxu0 0.0
    %1405 = vmatprep.mubr.f32.mxu0 0.0
    %v1406 = vand.u32 %v1335, 4294901760
    %v1407 = vsub.f32 %v1335, %v1406
    %v1408 = vand.u32 %v1407, 4294901760
    %v1409 = vsub.f32 %v1407, %v1408
    %v1410 = vand.u32 %v1409, 4294901760
    %1411 = vmatmul.mubr.f32.gmra.mxu0 %v1410
    %v1412 = vpop.f32.mrf.mxu0
    %v1413 = vadd.f32 %v1333, %v1412
    %v1414 = vpop.f32.mrf.mxu0
    %1415 = vdwg.mxu0
    %1416 = vmatprep.subr.mxu0 0.0
    %1417 = vmatpush1.msra.mxu0 0.0
    %1418 = vmatprep.subr.mxu0 0.0
    %1419 = vmatpush1.msra.mxu0 0.0
    %1420 = vmatprep.subr.mxu0 0.0
    %1421 = vmatpush1.msra.mxu0 0.0
    %1422 = vmatprep.subr.mxu0 0.0
    %1423 = vmatpush1.msra.mxu0 0.0
    %1424 = vmatprep.subr.mxu0 0.0
    %1425 = vmatpush1.msra.mxu0 0.0
    %1426 = vmatprep.subr.mxu0 0.0
    %1427 = vmatpush1.msra.mxu0 0.0
    %1428 = vmatprep.subr.mxu0 0.0
    %1429 = vmatpush1.msra.mxu0 0.0
    %1430 = vmatprep.subr.mxu0 0.0
    %1431 = vmatpush1.msra.mxu0 0.0
    %1432 = vmatprep.subr.mxu0 0.0
    %1433 = vmatpush1.msra.mxu0 0.0
    %1434 = vmatprep.subr.mxu0 0.0
    %1435 = vmatpush1.msra.mxu0 0.0
    %1436 = vmatprep.subr.mxu0 0.0
    %1437 = vmatpush1.msra.mxu0 0.0
    %1438 = vmatprep.subr.mxu0 0.0
    %1439 = vmatpush1.msra.mxu0 0.0
    %1440 = vmatprep.subr.mxu0 0.0
    %v1441 = vand.u32 %v1322, 4294901760
    %v1442 = vsub.f32 %v1322, %v1441
    %v1443 = vand.u32 %v1442, 4294901760
    %v1444 = vsub.f32 %v1442, %v1443
    %v1445 = vand.u32 %v1444, 4294901760
    %1446 = vmatpush1.msra.mxu0 %v1445
    %1447 = vmatprep.subr.mxu0 0.0
    %v1448 = vand.u32 %v1321, 4294901760
    %v1449 = vsub.f32 %v1321, %v1448
    %v1450 = vand.u32 %v1449, 4294901760
    %v1451 = vsub.f32 %v1449, %v1450
    %v1452 = vand.u32 %v1451, 4294901760
    %1453 = vmatpush1.msra.mxu0 %v1452
    %1454 = vmatprep.subr.mxu0 0.0
    %v1455 = vand.u32 %v1320, 4294901760
    %v1456 = vsub.f32 %v1320, %v1455
    %v1457 = vand.u32 %v1456, 4294901760
    %v1458 = vsub.f32 %v1456, %v1457
    %v1459 = vand.u32 %v1458, 4294901760
    %1460 = vmatpush1.msra.mxu0 %v1459
    %1461 = vmatprep.subr.mxu0 0.0
    %v1462 = vand.u32 %v1319, 4294901760
    %v1463 = vsub.f32 %v1319, %v1462
    %v1464 = vand.u32 %v1463, 4294901760
    %v1465 = vsub.f32 %v1463, %v1464
    %v1466 = vand.u32 %v1465, 4294901760
    %1467 = vmatpush1.msra.mxu0 %v1466
    %1468 = vmatprep.subr.mxu0 0.0
    %1469 = vmatpush2.msra.mxu0 0.0
    %1470 = vmatprep.subr.mxu0 0.0
    %1471 = vmatpush2.msra.mxu0 0.0
    %1472 = vmatprep.subr.mxu0 0.0
    %1473 = vmatpush2.msra.mxu0 0.0
    %1474 = vmatprep.subr.mxu0 0.0
    %1475 = vmatpush2.msra.mxu0 0.0
    %1476 = vmatprep.subr.mxu0 0.0
    %1477 = vmatpush2.msra.mxu0 0.0
    %1478 = vmatprep.subr.mxu0 0.0
    %1479 = vmatpush2.msra.mxu0 0.0
    %1480 = vmatprep.subr.mxu0 0.0
    %1481 = vmatpush2.msra.mxu0 0.0
    %1482 = vmatprep.subr.mxu0 0.0
    %1483 = vmatpush2.msra.mxu0 0.0
    %1484 = vmatprep.subr.mxu0 0.0
    %1485 = vmatpush2.msra.mxu0 0.0
    %1486 = vmatprep.subr.mxu0 0.0
    %1487 = vmatpush2.msra.mxu0 0.0
    %1488 = vmatprep.subr.mxu0 0.0
    %1489 = vmatpush2.msra.mxu0 0.0
    %1490 = vmatprep.subr.mxu0 0.0
    %1491 = vmatpush2.msra.mxu0 0.0
    %1492 = vmatprep.subr.mxu0 0.0
    %1493 = vmatpush2.msra.mxu0 0.0
    %1494 = vmatprep.subr.mxu0 0.0
    %1495 = vmatpush2.msra.mxu0 0.0
    %1496 = vmatprep.subr.mxu0 0.0
    %1497 = vmatpush2.msra.mxu0 0.0
    %1498 = vmatprep.subr.mxu0 0.0
    %1499 = vmatpush2.msra.mxu0 0.0
    %1500 = vmatprep.mubr.f32.mxu0 0.0
    %v1501 = vand.u32 %v1335, 4294901760
    %1502 = vmatmul.mubr.f32.gmra.mxu0 %v1501
    %v1503 = vpop.f32.mrf.mxu0
    %v1504 = vadd.f32 %v1413, %v1503
    %v1505 = vpop.f32.mrf.mxu0
    %1506 = vdwg.mxu0
    %1507 = vmatprep.subr.mxu0 0.0
    %1508 = vmatpush1.msra.mxu0 0.0
    %1509 = vmatprep.subr.mxu0 0.0
    %1510 = vmatpush1.msra.mxu0 0.0
    %1511 = vmatprep.subr.mxu0 0.0
    %1512 = vmatpush1.msra.mxu0 0.0
    %1513 = vmatprep.subr.mxu0 0.0
    %1514 = vmatpush1.msra.mxu0 0.0
    %1515 = vmatprep.subr.mxu0 0.0
    %1516 = vmatpush1.msra.mxu0 0.0
    %1517 = vmatprep.subr.mxu0 0.0
    %1518 = vmatpush1.msra.mxu0 0.0
    %1519 = vmatprep.subr.mxu0 0.0
    %1520 = vmatpush1.msra.mxu0 0.0
    %1521 = vmatprep.subr.mxu0 0.0
    %1522 = vmatpush1.msra.mxu0 0.0
    %1523 = vmatprep.subr.mxu0 0.0
    %1524 = vmatpush1.msra.mxu0 0.0
    %1525 = vmatprep.subr.mxu0 0.0
    %1526 = vmatpush1.msra.mxu0 0.0
    %1527 = vmatprep.subr.mxu0 0.0
    %1528 = vmatpush1.msra.mxu0 0.0
    %1529 = vmatprep.subr.mxu0 0.0
    %1530 = vmatpush1.msra.mxu0 0.0
    %1531 = vmatprep.subr.mxu0 0.0
    %v1532 = vand.u32 %v1322, 4294901760
    %v1533 = vsub.f32 %v1322, %v1532
    %1534 = vmatpush1.msra.mxu0 %v1533
    %1535 = vmatprep.subr.mxu0 0.0
    %v1536 = vand.u32 %v1321, 4294901760
    %v1537 = vsub.f32 %v1321, %v1536
    %1538 = vmatpush1.msra.mxu0 %v1537
    %1539 = vmatprep.subr.mxu0 0.0
    %v1540 = vand.u32 %v1320, 4294901760
    %v1541 = vsub.f32 %v1320, %v1540
    %1542 = vmatpush1.msra.mxu0 %v1541
    %1543 = vmatprep.subr.mxu0 0.0
    %v1544 = vand.u32 %v1319, 4294901760
    %v1545 = vsub.f32 %v1319, %v1544
    %1546 = vmatpush1.msra.mxu0 %v1545
    %1547 = vmatprep.subr.mxu0 0.0
    %1548 = vmatpush2.msra.mxu0 0.0
    %1549 = vmatprep.subr.mxu0 0.0
    %1550 = vmatpush2.msra.mxu0 0.0
    %1551 = vmatprep.subr.mxu0 0.0
    %1552 = vmatpush2.msra.mxu0 0.0
    %1553 = vmatprep.subr.mxu0 0.0
    %1554 = vmatpush2.msra.mxu0 0.0
    %1555 = vmatprep.subr.mxu0 0.0
    %1556 = vmatpush2.msra.mxu0 0.0
    %1557 = vmatprep.subr.mxu0 0.0
    %1558 = vmatpush2.msra.mxu0 0.0
    %1559 = vmatprep.subr.mxu0 0.0
    %1560 = vmatpush2.msra.mxu0 0.0
    %1561 = vmatprep.subr.mxu0 0.0
    %1562 = vmatpush2.msra.mxu0 0.0
    %1563 = vmatprep.subr.mxu0 0.0
    %1564 = vmatpush2.msra.mxu0 0.0
    %1565 = vmatprep.subr.mxu0 0.0
    %1566 = vmatpush2.msra.mxu0 0.0
    %1567 = vmatprep.subr.mxu0 0.0
    %1568 = vmatpush2.msra.mxu0 0.0
    %1569 = vmatprep.subr.mxu0 0.0
    %1570 = vmatpush2.msra.mxu0 0.0
    %1571 = vmatprep.subr.mxu0 0.0
    %1572 = vmatpush2.msra.mxu0 0.0
    %1573 = vmatprep.subr.mxu0 0.0
    %1574 = vmatpush2.msra.mxu0 0.0
    %1575 = vmatprep.subr.mxu0 0.0
    %1576 = vmatpush2.msra.mxu0 0.0
    %1577 = vmatprep.subr.mxu0 0.0
    %1578 = vmatpush2.msra.mxu0 0.0
    %1579 = vmatprep.mubr.f32.mxu0 0.0
    %v1580 = vand.u32 %v1335, 4294901760
    %v1581 = vsub.f32 %v1335, %v1580
    %1582 = vmatmul.mubr.f32.gmra.mxu0 %v1581
    %v1583 = vpop.f32.mrf.mxu0
    %v1584 = vadd.f32 %v1504, %v1583
    %v1585 = vpop.f32.mrf.mxu0
    %1586 = vdwg.mxu0
    %1587 = vmatprep.subr.mxu0 0.0
    %1588 = vmatpush1.msra.mxu0 0.0
    %1589 = vmatprep.subr.mxu0 0.0
    %1590 = vmatpush1.msra.mxu0 0.0
    %1591 = vmatprep.subr.mxu0 0.0
    %1592 = vmatpush1.msra.mxu0 0.0
    %1593 = vmatprep.subr.mxu0 0.0
    %1594 = vmatpush1.msra.mxu0 0.0
    %1595 = vmatprep.subr.mxu0 0.0
    %1596 = vmatpush1.msra.mxu0 0.0
    %1597 = vmatprep.subr.mxu0 0.0
    %1598 = vmatpush1.msra.mxu0 0.0
    %1599 = vmatprep.subr.mxu0 0.0
    %1600 = vmatpush1.msra.mxu0 0.0
    %1601 = vmatprep.subr.mxu0 0.0
    %1602 = vmatpush1.msra.mxu0 0.0
    %1603 = vmatprep.subr.mxu0 0.0
    %1604 = vmatpush1.msra.mxu0 0.0
    %1605 = vmatprep.subr.mxu0 0.0
    %1606 = vmatpush1.msra.mxu0 0.0
    %1607 = vmatprep.subr.mxu0 0.0
    %1608 = vmatpush1.msra.mxu0 0.0
    %1609 = vmatprep.subr.mxu0 0.0
    %1610 = vmatpush1.msra.mxu0 0.0
    %1611 = vmatprep.subr.mxu0 0.0
    %v1612 = vand.u32 %v1322, 4294901760
    %1613 = vmatpush1.msra.mxu0 %v1612
    %1614 = vmatprep.subr.mxu0 0.0
    %v1615 = vand.u32 %v1321, 4294901760
    %1616 = vmatpush1.msra.mxu0 %v1615
    %1617 = vmatprep.subr.mxu0 0.0
    %v1618 = vand.u32 %v1320, 4294901760
    %1619 = vmatpush1.msra.mxu0 %v1618
    %1620 = vmatprep.subr.mxu0 0.0
    %v1621 = vand.u32 %v1319, 4294901760
    %1622 = vmatpush1.msra.mxu0 %v1621
    %1623 = vmatprep.subr.mxu0 0.0
    %1624 = vmatpush2.msra.mxu0 0.0
    %1625 = vmatprep.subr.mxu0 0.0
    %1626 = vmatpush2.msra.mxu0 0.0
    %1627 = vmatprep.subr.mxu0 0.0
    %1628 = vmatpush2.msra.mxu0 0.0
    %1629 = vmatprep.subr.mxu0 0.0
    %1630 = vmatpush2.msra.mxu0 0.0
    %1631 = vmatprep.subr.mxu0 0.0
    %1632 = vmatpush2.msra.mxu0 0.0
    %1633 = vmatprep.subr.mxu0 0.0
    %1634 = vmatpush2.msra.mxu0 0.0
    %1635 = vmatprep.subr.mxu0 0.0
    %1636 = vmatpush2.msra.mxu0 0.0
    %1637 = vmatprep.subr.mxu0 0.0
    %1638 = vmatpush2.msra.mxu0 0.0
    %1639 = vmatprep.subr.mxu0 0.0
    %1640 = vmatpush2.msra.mxu0 0.0
    %1641 = vmatprep.subr.mxu0 0.0
    %1642 = vmatpush2.msra.mxu0 0.0
    %1643 = vmatprep.subr.mxu0 0.0
    %1644 = vmatpush2.msra.mxu0 0.0
    %1645 = vmatprep.subr.mxu0 0.0
    %1646 = vmatpush2.msra.mxu0 0.0
    %1647 = vmatprep.subr.mxu0 0.0
    %1648 = vmatpush2.msra.mxu0 0.0
    %1649 = vmatprep.subr.mxu0 0.0
    %1650 = vmatpush2.msra.mxu0 0.0
    %1651 = vmatprep.subr.mxu0 0.0
    %1652 = vmatpush2.msra.mxu0 0.0
    %1653 = vmatprep.subr.mxu0 0.0
    %1654 = vmatpush2.msra.mxu0 0.0
    %1655 = vmatprep.mubr.f32.mxu0 0.0
    %v1656 = vand.u32 %v1335, 4294901760
    %v1657 = vsub.f32 %v1335, %v1656
    %v1658 = vand.u32 %v1657, 4294901760
    %1659 = vmatmul.mubr.f32.gmra.mxu0 %v1658
    %v1660 = vpop.f32.mrf.mxu0
    %v1661 = vadd.f32 %v1584, %v1660
    %v1662 = vpop.f32.mrf.mxu0
    %1663 = vdwg.mxu0
    %1664 = vmatprep.subr.mxu0 0.0
    %1665 = vmatpush1.msra.mxu0 0.0
    %1666 = vmatprep.subr.mxu0 0.0
    %1667 = vmatpush1.msra.mxu0 0.0
    %1668 = vmatprep.subr.mxu0 0.0
    %1669 = vmatpush1.msra.mxu0 0.0
    %1670 = vmatprep.subr.mxu0 0.0
    %1671 = vmatpush1.msra.mxu0 0.0
    %1672 = vmatprep.subr.mxu0 0.0
    %1673 = vmatpush1.msra.mxu0 0.0
    %1674 = vmatprep.subr.mxu0 0.0
    %1675 = vmatpush1.msra.mxu0 0.0
    %1676 = vmatprep.subr.mxu0 0.0
    %1677 = vmatpush1.msra.mxu0 0.0
    %1678 = vmatprep.subr.mxu0 0.0
    %1679 = vmatpush1.msra.mxu0 0.0
    %1680 = vmatprep.subr.mxu0 0.0
    %1681 = vmatpush1.msra.mxu0 0.0
    %1682 = vmatprep.subr.mxu0 0.0
    %1683 = vmatpush1.msra.mxu0 0.0
    %1684 = vmatprep.subr.mxu0 0.0
    %1685 = vmatpush1.msra.mxu0 0.0
    %1686 = vmatprep.subr.mxu0 0.0
    %1687 = vmatpush1.msra.mxu0 0.0
    %1688 = vmatprep.subr.mxu0 0.0
    %v1689 = vand.u32 %v1322, 4294901760
    %v1690 = vsub.f32 %v1322, %v1689
    %v1691 = vand.u32 %v1690, 4294901760
    %1692 = vmatpush1.msra.mxu0 %v1691
    %1693 = vmatprep.subr.mxu0 0.0
    %v1694 = vand.u32 %v1321, 4294901760
    %v1695 = vsub.f32 %v1321, %v1694
    %v1696 = vand.u32 %v1695, 4294901760
    %1697 = vmatpush1.msra.mxu0 %v1696
    %1698 = vmatprep.subr.mxu0 0.0
    %v1699 = vand.u32 %v1320, 4294901760
    %v1700 = vsub.f32 %v1320, %v1699
    %v1701 = vand.u32 %v1700, 4294901760
    %1702 = vmatpush1.msra.mxu0 %v1701
    %1703 = vmatprep.subr.mxu0 0.0
    %v1704 = vand.u32 %v1319, 4294901760
    %v1705 = vsub.f32 %v1319, %v1704
    %v1706 = vand.u32 %v1705, 4294901760
    %1707 = vmatpush1.msra.mxu0 %v1706
    %1708 = vmatprep.subr.mxu0 0.0
    %1709 = vmatpush2.msra.mxu0 0.0
    %1710 = vmatprep.subr.mxu0 0.0
    %1711 = vmatpush2.msra.mxu0 0.0
    %1712 = vmatprep.subr.mxu0 0.0
    %1713 = vmatpush2.msra.mxu0 0.0
    %1714 = vmatprep.subr.mxu0 0.0
    %1715 = vmatpush2.msra.mxu0 0.0
    %1716 = vmatprep.subr.mxu0 0.0
    %1717 = vmatpush2.msra.mxu0 0.0
    %1718 = vmatprep.subr.mxu0 0.0
    %1719 = vmatpush2.msra.mxu0 0.0
    %1720 = vmatprep.subr.mxu0 0.0
    %1721 = vmatpush2.msra.mxu0 0.0
    %1722 = vmatprep.subr.mxu0 0.0
    %1723 = vmatpush2.msra.mxu0 0.0
    %1724 = vmatprep.subr.mxu0 0.0
    %1725 = vmatpush2.msra.mxu0 0.0
    %1726 = vmatprep.subr.mxu0 0.0
    %1727 = vmatpush2.msra.mxu0 0.0
    %1728 = vmatprep.subr.mxu0 0.0
    %1729 = vmatpush2.msra.mxu0 0.0
    %1730 = vmatprep.subr.mxu0 0.0
    %1731 = vmatpush2.msra.mxu0 0.0
    %1732 = vmatprep.subr.mxu0 0.0
    %1733 = vmatpush2.msra.mxu0 0.0
    %1734 = vmatprep.subr.mxu0 0.0
    %1735 = vmatpush2.msra.mxu0 0.0
    %1736 = vmatprep.subr.mxu0 0.0
    %1737 = vmatpush2.msra.mxu0 0.0
    %1738 = vmatprep.subr.mxu0 0.0
    %1739 = vmatpush2.msra.mxu0 0.0
    %1740 = vmatprep.mubr.f32.mxu0 0.0
    %v1741 = vand.u32 %v1335, 4294901760
    %1742 = vmatmul.mubr.f32.gmra.mxu0 %v1741
    %v1743 = vpop.f32.mrf.mxu0
    %v1744 = vadd.f32 %v1661, %v1743
    %v1745 = vpop.f32.mrf.mxu0
    %1746 = vdwg.mxu0
    %1747 = vmatprep.subr.mxu0 0.0
    %1748 = vmatpush1.msra.mxu0 0.0
    %1749 = vmatprep.subr.mxu0 0.0
    %1750 = vmatpush1.msra.mxu0 0.0
    %1751 = vmatprep.subr.mxu0 0.0
    %1752 = vmatpush1.msra.mxu0 0.0
    %1753 = vmatprep.subr.mxu0 0.0
    %1754 = vmatpush1.msra.mxu0 0.0
    %1755 = vmatprep.subr.mxu0 0.0
    %1756 = vmatpush1.msra.mxu0 0.0
    %1757 = vmatprep.subr.mxu0 0.0
    %1758 = vmatpush1.msra.mxu0 0.0
    %1759 = vmatprep.subr.mxu0 0.0
    %1760 = vmatpush1.msra.mxu0 0.0
    %1761 = vmatprep.subr.mxu0 0.0
    %1762 = vmatpush1.msra.mxu0 0.0
    %1763 = vmatprep.subr.mxu0 0.0
    %1764 = vmatpush1.msra.mxu0 0.0
    %1765 = vmatprep.subr.mxu0 0.0
    %1766 = vmatpush1.msra.mxu0 0.0
    %1767 = vmatprep.subr.mxu0 0.0
    %1768 = vmatpush1.msra.mxu0 0.0
    %1769 = vmatprep.subr.mxu0 0.0
    %1770 = vmatpush1.msra.mxu0 0.0
    %1771 = vmatprep.subr.mxu0 0.0
    %v1772 = vand.u32 %v1322, 4294901760
    %1773 = vmatpush1.msra.mxu0 %v1772
    %1774 = vmatprep.subr.mxu0 0.0
    %v1775 = vand.u32 %v1321, 4294901760
    %1776 = vmatpush1.msra.mxu0 %v1775
    %1777 = vmatprep.subr.mxu0 0.0
    %v1778 = vand.u32 %v1320, 4294901760
    %1779 = vmatpush1.msra.mxu0 %v1778
    %1780 = vmatprep.subr.mxu0 0.0
    %v1781 = vand.u32 %v1319, 4294901760
    %1782 = vmatpush1.msra.mxu0 %v1781
    %1783 = vmatprep.subr.mxu0 0.0
    %1784 = vmatpush2.msra.mxu0 0.0
    %1785 = vmatprep.subr.mxu0 0.0
    %1786 = vmatpush2.msra.mxu0 0.0
    %1787 = vmatprep.subr.mxu0 0.0
    %1788 = vmatpush2.msra.mxu0 0.0
    %1789 = vmatprep.subr.mxu0 0.0
    %1790 = vmatpush2.msra.mxu0 0.0
    %1791 = vmatprep.subr.mxu0 0.0
    %1792 = vmatpush2.msra.mxu0 0.0
    %1793 = vmatprep.subr.mxu0 0.0
    %1794 = vmatpush2.msra.mxu0 0.0
    %1795 = vmatprep.subr.mxu0 0.0
    %1796 = vmatpush2.msra.mxu0 0.0
    %1797 = vmatprep.subr.mxu0 0.0
    %1798 = vmatpush2.msra.mxu0 0.0
    %1799 = vmatprep.subr.mxu0 0.0
    %1800 = vmatpush2.msra.mxu0 0.0
    %1801 = vmatprep.subr.mxu0 0.0
    %1802 = vmatpush2.msra.mxu0 0.0
    %1803 = vmatprep.subr.mxu0 0.0
    %1804 = vmatpush2.msra.mxu0 0.0
    %1805 = vmatprep.subr.mxu0 0.0
    %1806 = vmatpush2.msra.mxu0 0.0
    %1807 = vmatprep.subr.mxu0 0.0
    %1808 = vmatpush2.msra.mxu0 0.0
    %1809 = vmatprep.subr.mxu0 0.0
    %1810 = vmatpush2.msra.mxu0 0.0
    %1811 = vmatprep.subr.mxu0 0.0
    %1812 = vmatpush2.msra.mxu0 0.0
    %1813 = vmatprep.subr.mxu0 0.0
    %1814 = vmatpush2.msra.mxu0 0.0
    %1815 = vmatprep.mubr.f32.mxu0 0.0
    %v1816 = vand.u32 %v1335, 4294901760
    %1817 = vmatmul.mubr.f32.gmra.mxu0 %v1816
    %v1818 = vpop.f32.mrf.mxu0
    %v1819 = vadd.f32 %v1744, %v1818
    %v1820 = vpop.f32.mrf.mxu0
    %1821 = vdwg.mxu0
    %v1822 = vxor.u32 %v1819, 2147483648
    %v1823 = vmul.f32 %v1822, 1.442695
    %v1824 = vpow.pop %v1823
    %v1825 = vadd.f32 %v1824, 1.0
    %v1826 = vrcp.pop %v1825
    %v1827 = vmul.f32 1.0, %v1826
    %vm1828 = vcmask 57344
    %1829 = vst.msk [vmem:[#allocation3] sm:$0x1] %vm1828, %v1827
    // Predicated region
    $region30: #{tpu_custom_call.1} parent=1 // pred_check
      _
    $region31: #{tpu_custom_call.1} parent=1 // pred_check_branch
      %1831 = sbr.rel (0) target = $region33
    $region32: #{tpu_custom_call.1} parent=1 // pred_region
      %s1833 = ssub.s32 16, 16
      %1834 = vsyncadd [#allocation4], %s1833
      %s1836 = sshll.u32 [#allocation3], 4
      %s1837 = int_to_ptr.vmem [resolvable:$true] %s1836
      %1839 = dma.vmem_to_hbm [thread:$0]  %s1837, 16, %s7, [#allocation4]
    $region33: #{tpu_custom_call.1} parent=1 // pred_fallthru
      _
    // Predicated region
    $region34: #{tpu_custom_call.1} parent=1 // pred_check
      _
    $region35: #{tpu_custom_call.1} parent=1 // pred_check_branch
      %1841 = sbr.rel (0) target = $region37
    $region36: #{tpu_custom_call.1} parent=1 // pred_region
      %1842 = dma.done [#allocation4], 16
    $region37: #{tpu_custom_call.1} parent=1 // pred_fallthru
      _
    %1843 = vsyncpa [#allocation4], 1

</llo_original>
